<compile_context>
chip_gen: v7x
topology: tpu7x:2x2x1
jax: 0.10.0
libtpu: 0.0.40
codegen_flags: <defaults>
</compile_context>

<pallas_src>
import math

import jax
import jax.numpy as jnp
from jax.experimental import pallas as pl
from jax.experimental.pallas import tpu as pltpu


# -----------------------------------------------------------------------------
# Static buffers (replicates NeuralUpsampler.__init__ buffer construction)
# -----------------------------------------------------------------------------
def build_knn_buffers(img_resolution, raw_resolution):
    lin = jnp.linspace(0.0, 1.0, img_resolution)
    u, v = jnp.meshgrid(lin, lin, indexing="ij")                 # (R, R) each
    uv = jnp.transpose(jnp.stack([u, v], axis=-1), (2, 1, 0))    # (2, R, R)

    # F.interpolate(..., mode='nearest') downsample: src = floor(dst * in/out)
    idx = jnp.floor(
        jnp.arange(raw_resolution) * (img_resolution / raw_resolution)
    ).astype(jnp.int32)
    idx = jnp.clip(idx, 0, img_resolution - 1)
    uv_guide = uv[:, idx][:, :, idx]                             # (2, r, r)

    uv_flat = jnp.transpose(uv, (1, 2, 0)).reshape(-1, 2)        # (R*R, 2)
    uvg_flat = jnp.transpose(uv_guide, (1, 2, 0)).reshape(-1, 2)  # (r*r, 2)

    dist = jnp.linalg.norm(uv_flat[:, None, :] - uvg_flat[None, :, :], axis=-1)
    neg_d, knn_index = jax.lax.top_k(-dist, 4)                   # smallest-4
    knn_dist = -neg_d                                            # (R*R, 4)

    knn_index = knn_index.reshape(-1)                            # (R*R*4,)
    knn_dist = knn_dist.T.reshape(4, img_resolution, img_resolution)
    return knn_index, knn_dist


# -----------------------------------------------------------------------------
# Bilinear upsample, matching F.interpolate(mode='bilinear', align_corners=False)
# -----------------------------------------------------------------------------
def bilinear_upsample(img, out_size):
    n, c, h_in, w_in = img.shape

    def src_coords(out_len, in_len):
        scale = in_len / out_len
        src = (jnp.arange(out_len) + 0.5) * scale - 0.5
        src = jnp.maximum(src, 0.0)                    # PyTorch clamps src < 0
        i0 = jnp.clip(jnp.floor(src).astype(jnp.int32), 0, in_len - 1)
        i1 = jnp.minimum(i0 + 1, in_len - 1)
        frac = src - i0.astype(src.dtype)
        return i0, i1, frac

    y0, y1, fy = src_coords(out_size, h_in)
    x0, x1, fx = src_coords(out_size, w_in)

    top = img[:, :, y0, :]
    bot = img[:, :, y1, :]
    row = top * (1.0 - fy)[None, None, :, None] + bot * fy[None, None, :, None]
    left = row[:, :, :, x0]
    right = row[:, :, :, x1]
    return left * (1.0 - fx)[None, None, None, :] + right * fx[None, None, None, :]


# -----------------------------------------------------------------------------
# Pallas kernel: Generator (1x1 conv MLP + InstanceNorm + ReLU) + final blend.
# Layout inside the kernel: (channels, N*H*W) = (sublanes, lanes).
# -----------------------------------------------------------------------------
def make_upsampler_kernel(num_layers, n_batch, pix, img_channels, raw_channels, c_max):
    eps = 1e-5
    bf16 = jnp.bfloat16

    def instance_norm_relu(t):
        # Segmented lane reduction: stats per (batch, channel) over its own
        # 128-aligned 'pix'-wide lane slab (whole-image H*W statistics).
        segs = []
        for bi in range(n_batch):
            seg = t[:, bi * pix:(bi + 1) * pix]
            mu = jnp.mean(seg, axis=-1, keepdims=True)
            ctr = seg - mu
            var = jnp.mean(ctr * ctr, axis=-1, keepdims=True)
            segs.append(jnp.maximum(ctr * jax.lax.rsqrt(var + eps), 0.0))
        return segs[0] if n_batch == 1 else jnp.concatenate(segs, axis=-1)

    def kernel(gx_ref, up_ref, g_ref, d_ref, w_ref, b_ref, out_ref, wm_ref):
        gx = gx_ref[...]                        # (rc, N*P)  bf16
        upv = up_ref[...]                       # (C,  N*P)  bf16
        dv = d_ref[...]                         # (4,  P)    bf16 (batch-invariant)

        # ---- Generator layer 0: split weight columns, no concatenated input ----
        # x = cat([guides_x[:, :rc], upsampled[:, :rc], dists]) is realized as
        # Wg@gx + Wu@up[:rc] + (Wd@dists tiled over batch) + b0.
        wg = w_ref[0][:, :raw_channels]         # (c_max, rc)  bf16, offset-0 slice
        wu = w_ref[1][:, :raw_channels]
        wd = w_ref[2][:, :4]
        b0 = b_ref[0]                           # (c_max, 1)   f32
        h = (jnp.dot(wg, gx, preferred_element_type=jnp.float32)
             + jnp.dot(wu, upv[:raw_channels, :], preferred_element_type=jnp.float32)
             + b0)
        hd = jnp.dot(wd, dv, preferred_element_type=jnp.float32)   # (c_max, P)
        hd = hd if n_batch == 1 else jnp.concatenate([hd] * n_batch, axis=-1)
        h = h + hd                              # (c_max, N*P)  f32

        # ---- remaining layers: InstanceNorm + ReLU, then one MXU matmul ----
        for l in range(1, num_layers):
            h = instance_norm_relu(h)
            w = w_ref[2 + l]                    # (c_max, c_max)  bf16 (zero-padded)
            b = b_ref[l]                        # (c_max, 1)      f32
            h = jnp.dot(w, h.astype(bf16), preferred_element_type=jnp.float32) + b

        wm = h[:5, :]                           # (5, N*P) weight map, f32
        wm_ref[...] = wm.astype(wm_ref.dtype)

        # ---- blend: out[c,:] = sum_k guides[k,c,:]*wm[k,:] + up[c,:]*wm[4,:] ----
        # One (4*C, N*P) load; guides per k are static sublane slices; wm rows
        # are (1, N*P) sublane broadcasts.  All f32.
        gval = g_ref[...].astype(jnp.float32)
        acc = upv.astype(jnp.float32) * wm[4:5, :]
        for k in range(4):
            acc = acc + gval[k * img_channels:(k + 1) * img_channels, :] * wm[k:k + 1, :]
        out_ref[...] = acc.astype(out_ref.dtype)

    return kernel


# -----------------------------------------------------------------------------
# Full forward (glue + pallas_call)
# -----------------------------------------------------------------------------
def neural_upsampler_forward(img, params, knn_index, knn_dist,
                             img_resolution, raw_channels):
    n, c, r, _ = img.shape
    p = img_resolution * img_resolution
    num_layers = len(params)

    # Padded channel width for the weight slabs (multiple of 8 sublanes).
    dims = [params[0][0].shape[1]] + [w.shape[0] for w, _ in params] \
         + [w.shape[1] for w, _ in params]
    c_max = max(dims + [raw_channels, 8])
    c_max = (c_max + 7) // 8 * 8

    # --- wrapper glue: tiny data-independent index plumbing (plain JAX) ---
    upsampled = bilinear_upsample(img, img_resolution)                  # (N, C, H, W)
    up_in = jnp.transpose(upsampled, (1, 0, 2, 3)).reshape(c, n * p)    # (C, N*P)

    knn_pk = knn_index.reshape(p, 4)                                    # (P, 4)
    img_cnp = jnp.transpose(img, (1, 0, 2, 3)).reshape(c, n, r * r)     # (C, N, r*r)
    guide = jnp.transpose(img_cnp[:, :, knn_pk], (3, 0, 1, 2))          # (4, C, N, P)
    g_in = guide.reshape(4 * c, n * p)                                  # row = k*C + ch
    gx_in = jnp.transpose(guide, (1, 0, 2, 3)).reshape(c * 4, n * p)[:raw_channels]
    d_in = knn_dist.reshape(4, p)                                       # un-broadcast

    # bf16 DMA / MXU operands (accumulation + VPU/EUP math stay f32 in-kernel).
    gx_in = gx_in.astype(jnp.bfloat16)
    up_in = up_in.astype(jnp.bfloat16)
    g_in = g_in.astype(jnp.bfloat16)
    d_in = d_in.astype(jnp.bfloat16)

    # --- pack generator params: one bf16 weight slab + one f32 bias slab ---
    # Pages 0..2 hold layer-0's column blocks (gx / up / dists), each starting
    # at lane 0; pages 3.. hold layers 1..L-1 zero-padded to (c_max, c_max).
    wslab = jnp.zeros((num_layers + 2, c_max, c_max), jnp.float32)
    bslab = jnp.zeros((num_layers, c_max, 1), jnp.float32)
    w0, b0 = params[0]
    co0 = w0.shape[0]
    wslab = wslab.at[0, :co0, :raw_channels].set(w0[:, :raw_channels])
    wslab = wslab.at[1, :co0, :raw_channels].set(w0[:, raw_channels:2 * raw_channels])
    wslab = wslab.at[2, :co0, :4].set(w0[:, 2 * raw_channels:2 * raw_channels + 4])
    bslab = bslab.at[0, :co0, :].set(b0)
    for l in range(1, num_layers):
        w, b = params[l]
        wslab = wslab.at[2 + l, :w.shape[0], :w.shape[1]].set(w)
        bslab = bslab.at[l, :b.shape[0], :].set(b)
    wslab = wslab.astype(jnp.bfloat16)

    kernel = make_upsampler_kernel(num_layers, n, p, c, raw_channels, c_max)

    out_k, wm_k = pl.pallas_call(
        kernel,
        grid=(1,),                                   # batch folded into lanes
        in_specs=[
            pl.BlockSpec((raw_channels, n * p), lambda i: (0, 0)),
            pl.BlockSpec((c, n * p), lambda i: (0, 0)),
            pl.BlockSpec((4 * c, n * p), lambda i: (0, 0)),
            pl.BlockSpec((4, p), lambda i: (0, 0)),
            pl.BlockSpec(wslab.shape, lambda i: (0, 0, 0)),
            pl.BlockSpec(bslab.shape, lambda i: (0, 0, 0)),
        ],
        out_specs=[
            pl.BlockSpec((c, n * p), lambda i: (0, 0)),
            pl.BlockSpec((5, n * p), lambda i: (0, 0)),
        ],
        out_shape=[
            jax.ShapeDtypeStruct((c, n * p), jnp.float32),
            jax.ShapeDtypeStruct((5, n * p), jnp.float32),
        ],
        compiler_params=pltpu.CompilerParams(dimension_semantics=("arbitrary",)),
    )(gx_in, up_in, g_in, d_in, wslab, bslab)

    # (C, N*P) -> NCHW (tiny boundary permutes; free for n == 1).
    image = jnp.transpose(
        out_k.reshape(c, n, img_resolution, img_resolution), (1, 0, 2, 3))
    weight_map = jnp.transpose(
        wm_k.reshape(5, n, img_resolution, img_resolution), (1, 0, 2, 3))
    return {"image": image, "weight_map": weight_map}


# -----------------------------------------------------------------------------
# Pure-JAX f32 reference (same math, NCHW) for a correctness check
# -----------------------------------------------------------------------------
def reference_forward(img, params, knn_index, knn_dist,
                      img_resolution, raw_channels):
    n, c, _, _ = img.shape
    upsampled = bilinear_upsample(img, img_resolution)
    guides = img.reshape(n, c, -1)[:, :, knn_index].reshape(
        n, c, img_resolution, img_resolution, 4)
    guides_x = jnp.transpose(guides, (0, 1, 4, 2, 3)).reshape(
        n, c * 4, img_resolution, img_resolution)
    dists = jnp.broadcast_to(knn_dist[None], (n, 4, img_resolution, img_resolution))
    h = jnp.concatenate(
        [guides_x[:, :raw_channels], upsampled[:, :raw_channels], dists], axis=1)
    for l, (w, b) in enumerate(params):
        h = jnp.einsum("dc,nchw->ndhw", w, h) + b.reshape(1, -1, 1, 1)
        if l < len(params) - 1:
            mean = h.mean(axis=(2, 3), keepdims=True)
            var = ((h - mean) ** 2).mean(axis=(2, 3), keepdims=True)
            h = (h - mean) / jnp.sqrt(var + 1e-5)
            h = jnp.maximum(h, 0.0)
    weight_map = h
    out = jnp.einsum("nchwx,nxhw->nchw", guides, weight_map[:, :4]) \
        + upsampled * weight_map[:, 4:5]
    return {"image": out, "weight_map": weight_map}


# -----------------------------------------------------------------------------
# Main
# -----------------------------------------------------------------------------
if __name__ == "__main__":
    num_layers = 3
    hidden_features = 32
    img_channels = 4
    raw_channels = 4
    img_resolution = 16
    raw_resolution = 8

    knn_index, knn_dist = build_knn_buffers(img_resolution, raw_resolution)

    # Generator parameters (1x1 convs): W:(Cout, Cin), b:(Cout, 1).
    in_features = 2 * raw_channels + 4   # actual channel count produced by forward()
    layer_dims = [in_features] + [hidden_features] * (num_layers - 1) + [5]
    key = jax.random.PRNGKey(0)
    params = []
    for l in range(num_layers):
        key, kw, kb = jax.random.split(key, 3)
        cin, cout = layer_dims[l], layer_dims[l + 1]
        w = jax.random.normal(kw, (cout, cin), dtype=jnp.float32) / math.sqrt(cin)
        b = 0.01 * jax.random.normal(kb, (cout, 1), dtype=jnp.float32)
        params.append((w, b))

    # Input image at raw resolution (NCHW), as implied by the forward pass.
    key, kimg = jax.random.split(key)
    img = jax.random.normal(
        kimg, (2, img_channels, raw_resolution, raw_resolution), dtype=jnp.float32)

    result = neural_upsampler_forward(
        img, params, knn_index, knn_dist, img_resolution, raw_channels)
    jax.block_until_ready(result)

    ref = reference_forward(
        img, params, knn_index, knn_dist, img_resolution, raw_channels)
    jax.block_until_ready(ref)

    assert result["image"].shape == (2, img_channels, img_resolution, img_resolution)
    assert result["weight_map"].shape == (2, 5, img_resolution, img_resolution)

    # bf16 MXU operands (per perf review) bound the deviation from the pure-f32
    # reference to ~1e-2 absolute at these contraction depths (<= 32); the
    # relative-L2 checks guard against structural/indexing errors.
    def rel_l2(a, b):
        return float(jnp.linalg.norm((a - b).ravel())
                     / (jnp.linalg.norm(b.ravel()) + 1e-12))

    assert jnp.allclose(result["image"], ref["image"], atol=3e-2, rtol=3e-2)
    assert jnp.allclose(result["weight_map"], ref["weight_map"], atol=3e-2, rtol=3e-2)
    assert rel_l2(result["image"], ref["image"]) < 2e-2
    assert rel_l2(result["weight_map"], ref["weight_map"]) < 2e-2

    print("KERNEL_OK")
</pallas_src>

<mosaic_0001>
module attributes {stable_mosaic.version = 11 : i64} {
  func.func @kernel(%arg0: i32, %arg1: memref<4x512xbf16, #tpu.memory_space<vmem>>, %arg2: memref<4x512xbf16, #tpu.memory_space<vmem>>, %arg3: memref<16x512xbf16, #tpu.memory_space<vmem>>, %arg4: memref<4x256xbf16, #tpu.memory_space<vmem>>, %arg5: memref<5x32x32xbf16, #tpu.memory_space<vmem>>, %arg6: memref<3x32x1xf32, #tpu.memory_space<vmem>>, %arg7: memref<4x512xf32, #tpu.memory_space<vmem>>, %arg8: memref<5x512xf32, #tpu.memory_space<vmem>>) attributes {dimension_semantics = [#tpu.dimension_semantics<arbitrary>], iteration_bounds = array<i64: 1>, scalar_prefetch = 0 : i64, scratch_operands = 0 : i64, tpu.core_type = #tpu.core_type<tc>, window_params = [{pipeline_mode = #tpu.pipeline_mode<synchronous>, transform_indices = @transform_0, window_bounds = array<i64: 4, 512>}, {pipeline_mode = #tpu.pipeline_mode<synchronous>, transform_indices = @transform_1, window_bounds = array<i64: 4, 512>}, {pipeline_mode = #tpu.pipeline_mode<synchronous>, transform_indices = @transform_2, window_bounds = array<i64: 16, 512>}, {pipeline_mode = #tpu.pipeline_mode<synchronous>, transform_indices = @transform_3, window_bounds = array<i64: 4, 256>}, {pipeline_mode = #tpu.pipeline_mode<synchronous>, transform_indices = @transform_4, window_bounds = array<i64: 5, 32, 32>}, {pipeline_mode = #tpu.pipeline_mode<synchronous>, transform_indices = @transform_5, window_bounds = array<i64: 3, 32, 1>}, {pipeline_mode = #tpu.pipeline_mode<synchronous>, transform_indices = @transform_6, window_bounds = array<i64: 4, 512>}, {pipeline_mode = #tpu.pipeline_mode<synchronous>, transform_indices = @transform_7, window_bounds = array<i64: 5, 512>}]} {
    %c0 = arith.constant 0 : index
    %c0_0 = arith.constant 0 : index
    %0 = vector.load %arg1[%c0, %c0_0] : memref<4x512xbf16, #tpu.memory_space<vmem>>, vector<4x512xbf16>
    %c0_1 = arith.constant 0 : index
    %c0_2 = arith.constant 0 : index
    %1 = vector.load %arg2[%c0_1, %c0_2] : memref<4x512xbf16, #tpu.memory_space<vmem>>, vector<4x512xbf16>
    %c0_3 = arith.constant 0 : index
    %c0_4 = arith.constant 0 : index
    %2 = vector.load %arg4[%c0_3, %c0_4] : memref<4x256xbf16, #tpu.memory_space<vmem>>, vector<4x256xbf16>
    %c0_5 = arith.constant 0 : index
    %c0_6 = arith.constant 0 : index
    %c0_7 = arith.constant 0 : index
    %3 = vector.load %arg5[%c0_5, %c0_6, %c0_7] : memref<5x32x32xbf16, #tpu.memory_space<vmem>>, vector<1x32x32xbf16>
    %4 = vector.shape_cast %3 : vector<1x32x32xbf16> to vector<32x32xbf16>
    %5 = vector.extract_strided_slice %4 {offsets = [0, 0], sizes = [32, 4], strides = [1, 1]} : vector<32x32xbf16> to vector<32x4xbf16>
    %c1 = arith.constant 1 : index
    %c0_8 = arith.constant 0 : index
    %c0_9 = arith.constant 0 : index
    %6 = vector.load %arg5[%c1, %c0_8, %c0_9] : memref<5x32x32xbf16, #tpu.memory_space<vmem>>, vector<1x32x32xbf16>
    %7 = vector.shape_cast %6 : vector<1x32x32xbf16> to vector<32x32xbf16>
    %8 = vector.extract_strided_slice %7 {offsets = [0, 0], sizes = [32, 4], strides = [1, 1]} : vector<32x32xbf16> to vector<32x4xbf16>
    %c2 = arith.constant 2 : index
    %c0_10 = arith.constant 0 : index
    %c0_11 = arith.constant 0 : index
    %9 = vector.load %arg5[%c2, %c0_10, %c0_11] : memref<5x32x32xbf16, #tpu.memory_space<vmem>>, vector<1x32x32xbf16>
    %10 = vector.shape_cast %9 : vector<1x32x32xbf16> to vector<32x32xbf16>
    %11 = vector.extract_strided_slice %10 {offsets = [0, 0], sizes = [32, 4], strides = [1, 1]} : vector<32x32xbf16> to vector<32x4xbf16>
    %c0_12 = arith.constant 0 : index
    %c0_13 = arith.constant 0 : index
    %c0_14 = arith.constant 0 : index
    %12 = vector.load %arg6[%c0_12, %c0_13, %c0_14] : memref<3x32x1xf32, #tpu.memory_space<vmem>>, vector<1x32x1xf32>
    %13 = vector.shape_cast %12 : vector<1x32x1xf32> to vector<32x1xf32>
    %cst = arith.constant dense<0.000000e+00> : vector<32x512xf32>
    %14 = tpu.matmul %5, %0, %cst {dimension_numbers = #tpu.dot_dimension_numbers<[1], [0], [0], [1], [0, 0, 1, 1], [], []>} : vector<32x4xbf16>, vector<4x512xbf16>, vector<32x512xf32> -> vector<32x512xf32>
    %cst_15 = arith.constant dense<0.000000e+00> : vector<32x512xf32>
    %15 = tpu.matmul %8, %1, %cst_15 {dimension_numbers = #tpu.dot_dimension_numbers<[1], [0], [0], [1], [0, 0, 1, 1], [], []>} : vector<32x4xbf16>, vector<4x512xbf16>, vector<32x512xf32> -> vector<32x512xf32>
    %16 = arith.addf %14, %15 : vector<32x512xf32>
    %17 = vector.broadcast %13 : vector<32x1xf32> to vector<32x512xf32>
    %18 = arith.addf %16, %17 : vector<32x512xf32>
    %cst_16 = arith.constant dense<0.000000e+00> : vector<32x256xf32>
    %19 = tpu.matmul %11, %2, %cst_16 {dimension_numbers = #tpu.dot_dimension_numbers<[1], [0], [0], [1], [0, 0, 1, 1], [], []>} : vector<32x4xbf16>, vector<4x256xbf16>, vector<32x256xf32> -> vector<32x256xf32>
    %20 = tpu.concatenate %19, %19 in 1 : vector<32x256xf32>, vector<32x256xf32> -> vector<32x512xf32>
    %21 = arith.addf %18, %20 : vector<32x512xf32>
    %22 = vector.extract_strided_slice %21 {offsets = [0, 0], sizes = [32, 256], strides = [1, 1]} : vector<32x512xf32> to vector<32x256xf32>
    %cst_17 = arith.constant dense<0.000000e+00> : vector<32xf32>
    %23 = vector.multi_reduction <add>, %22, %cst_17 [1] : vector<32x256xf32> to vector<32xf32>
    %24 = vector.shape_cast %23 : vector<32xf32> to vector<32x1xf32>
    %cst_18 = arith.constant 2.560000e+02 : f32
    %25 = vector.broadcast %cst_18 : f32 to vector<32x1xf32>
    %26 = arith.divf %24, %25 : vector<32x1xf32>
    %27 = vector.broadcast %26 : vector<32x1xf32> to vector<32x256xf32>
    %28 = arith.subf %22, %27 : vector<32x256xf32>
    %29 = arith.mulf %28, %28 : vector<32x256xf32>
    %cst_19 = arith.constant dense<0.000000e+00> : vector<32xf32>
    %30 = vector.multi_reduction <add>, %29, %cst_19 [1] : vector<32x256xf32> to vector<32xf32>
    %31 = vector.shape_cast %30 : vector<32xf32> to vector<32x1xf32>
    %cst_20 = arith.constant 2.560000e+02 : f32
    %32 = vector.broadcast %cst_20 : f32 to vector<32x1xf32>
    %33 = arith.divf %31, %32 : vector<32x1xf32>
    %cst_21 = arith.constant 9.99999974E-6 : f32
    %34 = vector.broadcast %cst_21 : f32 to vector<32x1xf32>
    %35 = arith.addf %33, %34 : vector<32x1xf32>
    %36 = math.rsqrt %35 : vector<32x1xf32>
    %37 = vector.broadcast %36 : vector<32x1xf32> to vector<32x256xf32>
    %38 = arith.mulf %28, %37 : vector<32x256xf32>
    %cst_22 = arith.constant 0.000000e+00 : f32
    %39 = vector.broadcast %cst_22 : f32 to vector<32x256xf32>
    %40 = arith.maximumf %38, %39 : vector<32x256xf32>
    %41 = vector.extract_strided_slice %21 {offsets = [0, 256], sizes = [32, 256], strides = [1, 1]} : vector<32x512xf32> to vector<32x256xf32>
    %cst_23 = arith.constant dense<0.000000e+00> : vector<32xf32>
    %42 = vector.multi_reduction <add>, %41, %cst_23 [1] : vector<32x256xf32> to vector<32xf32>
    %43 = vector.shape_cast %42 : vector<32xf32> to vector<32x1xf32>
    %cst_24 = arith.constant 2.560000e+02 : f32
    %44 = vector.broadcast %cst_24 : f32 to vector<32x1xf32>
    %45 = arith.divf %43, %44 : vector<32x1xf32>
    %46 = vector.broadcast %45 : vector<32x1xf32> to vector<32x256xf32>
    %47 = arith.subf %41, %46 : vector<32x256xf32>
    %48 = arith.mulf %47, %47 : vector<32x256xf32>
    %cst_25 = arith.constant dense<0.000000e+00> : vector<32xf32>
    %49 = vector.multi_reduction <add>, %48, %cst_25 [1] : vector<32x256xf32> to vector<32xf32>
    %50 = vector.shape_cast %49 : vector<32xf32> to vector<32x1xf32>
    %cst_26 = arith.constant 2.560000e+02 : f32
    %51 = vector.broadcast %cst_26 : f32 to vector<32x1xf32>
    %52 = arith.divf %50, %51 : vector<32x1xf32>
    %cst_27 = arith.constant 9.99999974E-6 : f32
    %53 = vector.broadcast %cst_27 : f32 to vector<32x1xf32>
    %54 = arith.addf %52, %53 : vector<32x1xf32>
    %55 = math.rsqrt %54 : vector<32x1xf32>
    %56 = vector.broadcast %55 : vector<32x1xf32> to vector<32x256xf32>
    %57 = arith.mulf %47, %56 : vector<32x256xf32>
    %cst_28 = arith.constant 0.000000e+00 : f32
    %58 = vector.broadcast %cst_28 : f32 to vector<32x256xf32>
    %59 = arith.maximumf %57, %58 : vector<32x256xf32>
    %60 = tpu.concatenate %40, %59 in 1 : vector<32x256xf32>, vector<32x256xf32> -> vector<32x512xf32>
    %c3 = arith.constant 3 : index
    %c0_29 = arith.constant 0 : index
    %c0_30 = arith.constant 0 : index
    %61 = vector.load %arg5[%c3, %c0_29, %c0_30] : memref<5x32x32xbf16, #tpu.memory_space<vmem>>, vector<1x32x32xbf16>
    %62 = vector.shape_cast %61 : vector<1x32x32xbf16> to vector<32x32xbf16>
    %c1_31 = arith.constant 1 : index
    %c0_32 = arith.constant 0 : index
    %c0_33 = arith.constant 0 : index
    %63 = vector.load %arg6[%c1_31, %c0_32, %c0_33] : memref<3x32x1xf32, #tpu.memory_space<vmem>>, vector<1x32x1xf32>
    %64 = vector.shape_cast %63 : vector<1x32x1xf32> to vector<32x1xf32>
    %65 = arith.truncf %60 : vector<32x512xf32> to vector<32x512xbf16>
    %cst_34 = arith.constant dense<0.000000e+00> : vector<32x512xf32>
    %66 = tpu.matmul %62, %65, %cst_34 {dimension_numbers = #tpu.dot_dimension_numbers<[1], [0], [0], [1], [0, 0, 1, 1], [], []>} : vector<32x32xbf16>, vector<32x512xbf16>, vector<32x512xf32> -> vector<32x512xf32>
    %67 = vector.broadcast %64 : vector<32x1xf32> to vector<32x512xf32>
    %68 = arith.addf %66, %67 : vector<32x512xf32>
    %69 = vector.extract_strided_slice %68 {offsets = [0, 0], sizes = [32, 256], strides = [1, 1]} : vector<32x512xf32> to vector<32x256xf32>
    %cst_35 = arith.constant dense<0.000000e+00> : vector<32xf32>
    %70 = vector.multi_reduction <add>, %69, %cst_35 [1] : vector<32x256xf32> to vector<32xf32>
    %71 = vector.shape_cast %70 : vector<32xf32> to vector<32x1xf32>
    %cst_36 = arith.constant 2.560000e+02 : f32
    %72 = vector.broadcast %cst_36 : f32 to vector<32x1xf32>
    %73 = arith.divf %71, %72 : vector<32x1xf32>
    %74 = vector.broadcast %73 : vector<32x1xf32> to vector<32x256xf32>
    %75 = arith.subf %69, %74 : vector<32x256xf32>
    %76 = arith.mulf %75, %75 : vector<32x256xf32>
    %cst_37 = arith.constant dense<0.000000e+00> : vector<32xf32>
    %77 = vector.multi_reduction <add>, %76, %cst_37 [1] : vector<32x256xf32> to vector<32xf32>
    %78 = vector.shape_cast %77 : vector<32xf32> to vector<32x1xf32>
    %cst_38 = arith.constant 2.560000e+02 : f32
    %79 = vector.broadcast %cst_38 : f32 to vector<32x1xf32>
    %80 = arith.divf %78, %79 : vector<32x1xf32>
    %cst_39 = arith.constant 9.99999974E-6 : f32
    %81 = vector.broadcast %cst_39 : f32 to vector<32x1xf32>
    %82 = arith.addf %80, %81 : vector<32x1xf32>
    %83 = math.rsqrt %82 : vector<32x1xf32>
    %84 = vector.broadcast %83 : vector<32x1xf32> to vector<32x256xf32>
    %85 = arith.mulf %75, %84 : vector<32x256xf32>
    %cst_40 = arith.constant 0.000000e+00 : f32
    %86 = vector.broadcast %cst_40 : f32 to vector<32x256xf32>
    %87 = arith.maximumf %85, %86 : vector<32x256xf32>
    %88 = vector.extract_strided_slice %68 {offsets = [0, 256], sizes = [32, 256], strides = [1, 1]} : vector<32x512xf32> to vector<32x256xf32>
    %cst_41 = arith.constant dense<0.000000e+00> : vector<32xf32>
    %89 = vector.multi_reduction <add>, %88, %cst_41 [1] : vector<32x256xf32> to vector<32xf32>
    %90 = vector.shape_cast %89 : vector<32xf32> to vector<32x1xf32>
    %cst_42 = arith.constant 2.560000e+02 : f32
    %91 = vector.broadcast %cst_42 : f32 to vector<32x1xf32>
    %92 = arith.divf %90, %91 : vector<32x1xf32>
    %93 = vector.broadcast %92 : vector<32x1xf32> to vector<32x256xf32>
    %94 = arith.subf %88, %93 : vector<32x256xf32>
    %95 = arith.mulf %94, %94 : vector<32x256xf32>
    %cst_43 = arith.constant dense<0.000000e+00> : vector<32xf32>
    %96 = vector.multi_reduction <add>, %95, %cst_43 [1] : vector<32x256xf32> to vector<32xf32>
    %97 = vector.shape_cast %96 : vector<32xf32> to vector<32x1xf32>
    %cst_44 = arith.constant 2.560000e+02 : f32
    %98 = vector.broadcast %cst_44 : f32 to vector<32x1xf32>
    %99 = arith.divf %97, %98 : vector<32x1xf32>
    %cst_45 = arith.constant 9.99999974E-6 : f32
    %100 = vector.broadcast %cst_45 : f32 to vector<32x1xf32>
    %101 = arith.addf %99, %100 : vector<32x1xf32>
    %102 = math.rsqrt %101 : vector<32x1xf32>
    %103 = vector.broadcast %102 : vector<32x1xf32> to vector<32x256xf32>
    %104 = arith.mulf %94, %103 : vector<32x256xf32>
    %cst_46 = arith.constant 0.000000e+00 : f32
    %105 = vector.broadcast %cst_46 : f32 to vector<32x256xf32>
    %106 = arith.maximumf %104, %105 : vector<32x256xf32>
    %107 = tpu.concatenate %87, %106 in 1 : vector<32x256xf32>, vector<32x256xf32> -> vector<32x512xf32>
    %c4 = arith.constant 4 : index
    %c0_47 = arith.constant 0 : index
    %c0_48 = arith.constant 0 : index
    %108 = vector.load %arg5[%c4, %c0_47, %c0_48] : memref<5x32x32xbf16, #tpu.memory_space<vmem>>, vector<1x32x32xbf16>
    %109 = vector.shape_cast %108 : vector<1x32x32xbf16> to vector<32x32xbf16>
    %c2_49 = arith.constant 2 : index
    %c0_50 = arith.constant 0 : index
    %c0_51 = arith.constant 0 : index
    %110 = vector.load %arg6[%c2_49, %c0_50, %c0_51] : memref<3x32x1xf32, #tpu.memory_space<vmem>>, vector<1x32x1xf32>
    %111 = vector.shape_cast %110 : vector<1x32x1xf32> to vector<32x1xf32>
    %112 = arith.truncf %107 : vector<32x512xf32> to vector<32x512xbf16>
    %cst_52 = arith.constant dense<0.000000e+00> : vector<32x512xf32>
    %113 = tpu.matmul %109, %112, %cst_52 {dimension_numbers = #tpu.dot_dimension_numbers<[1], [0], [0], [1], [0, 0, 1, 1], [], []>} : vector<32x32xbf16>, vector<32x512xbf16>, vector<32x512xf32> -> vector<32x512xf32>
    %114 = vector.broadcast %111 : vector<32x1xf32> to vector<32x512xf32>
    %115 = arith.addf %113, %114 : vector<32x512xf32>
    %116 = vector.extract_strided_slice %115 {offsets = [0, 0], sizes = [5, 512], strides = [1, 1]} : vector<32x512xf32> to vector<5x512xf32>
    %c0_53 = arith.constant 0 : index
    %c0_54 = arith.constant 0 : index
    %117 = vector.load %arg8[%c0_53, %c0_54] : memref<5x512xf32, #tpu.memory_space<vmem>>, vector<5x512xf32>
    tpu.vector_store %arg8[%c0_53, %c0_54], %116 {strides = array<i32>} : memref<5x512xf32, #tpu.memory_space<vmem>>, vector<5x512xf32>,
    %c0_55 = arith.constant 0 : index
    %c0_56 = arith.constant 0 : index
    %118 = vector.load %arg3[%c0_55, %c0_56] : memref<16x512xbf16, #tpu.memory_space<vmem>>, vector<16x512xbf16>
    %119 = arith.extf %118 : vector<16x512xbf16> to vector<16x512xf32>
    %120 = arith.extf %1 : vector<4x512xbf16> to vector<4x512xf32>
    %121 = vector.extract_strided_slice %116 {offsets = [4, 0], sizes = [1, 512], strides = [1, 1]} : vector<5x512xf32> to vector<1x512xf32>
    %122 = vector.broadcast %121 : vector<1x512xf32> to vector<4x512xf32>
    %123 = arith.mulf %120, %122 : vector<4x512xf32>
    %124 = vector.extract_strided_slice %119 {offsets = [0, 0], sizes = [4, 512], strides = [1, 1]} : vector<16x512xf32> to vector<4x512xf32>
    %125 = vector.extract_strided_slice %116 {offsets = [0, 0], sizes = [1, 512], strides = [1, 1]} : vector<5x512xf32> to vector<1x512xf32>
    %126 = vector.broadcast %125 : vector<1x512xf32> to vector<4x512xf32>
    %127 = arith.mulf %124, %126 : vector<4x512xf32>
    %128 = arith.addf %123, %127 : vector<4x512xf32>
    %129 = vector.extract_strided_slice %119 {offsets = [4, 0], sizes = [4, 512], strides = [1, 1]} : vector<16x512xf32> to vector<4x512xf32>
    %130 = vector.extract_strided_slice %116 {offsets = [1, 0], sizes = [1, 512], strides = [1, 1]} : vector<5x512xf32> to vector<1x512xf32>
    %131 = vector.broadcast %130 : vector<1x512xf32> to vector<4x512xf32>
    %132 = arith.mulf %129, %131 : vector<4x512xf32>
    %133 = arith.addf %128, %132 : vector<4x512xf32>
    %134 = vector.extract_strided_slice %119 {offsets = [8, 0], sizes = [4, 512], strides = [1, 1]} : vector<16x512xf32> to vector<4x512xf32>
    %135 = vector.extract_strided_slice %116 {offsets = [2, 0], sizes = [1, 512], strides = [1, 1]} : vector<5x512xf32> to vector<1x512xf32>
    %136 = vector.broadcast %135 : vector<1x512xf32> to vector<4x512xf32>
    %137 = arith.mulf %134, %136 : vector<4x512xf32>
    %138 = arith.addf %133, %137 : vector<4x512xf32>
    %139 = vector.extract_strided_slice %119 {offsets = [12, 0], sizes = [4, 512], strides = [1, 1]} : vector<16x512xf32> to vector<4x512xf32>
    %140 = vector.extract_strided_slice %116 {offsets = [3, 0], sizes = [1, 512], strides = [1, 1]} : vector<5x512xf32> to vector<1x512xf32>
    %141 = vector.broadcast %140 : vector<1x512xf32> to vector<4x512xf32>
    %142 = arith.mulf %139, %141 : vector<4x512xf32>
    %143 = arith.addf %138, %142 : vector<4x512xf32>
    %c0_57 = arith.constant 0 : index
    %c0_58 = arith.constant 0 : index
    %144 = vector.load %arg7[%c0_57, %c0_58] : memref<4x512xf32, #tpu.memory_space<vmem>>, vector<4x512xf32>
    tpu.vector_store %arg7[%c0_57, %c0_58], %143 {strides = array<i32>} : memref<4x512xf32, #tpu.memory_space<vmem>>, vector<4x512xf32>,
    return
  }
  func.func @transform_0(%arg0: i32) -> (i32, i32) {
    %c0_i32 = arith.constant 0 : i32
    %c0_i32_0 = arith.constant 0 : i32
    %c0_i32_1 = arith.constant 0 : i32
    return %c0_i32, %c0_i32_0 : i32, i32
  }
  func.func @transform_1(%arg0: i32) -> (i32, i32) {
    %c0_i32 = arith.constant 0 : i32
    %c0_i32_0 = arith.constant 0 : i32
    %c0_i32_1 = arith.constant 0 : i32
    return %c0_i32, %c0_i32_0 : i32, i32
  }
  func.func @transform_2(%arg0: i32) -> (i32, i32) {
    %c0_i32 = arith.constant 0 : i32
    %c0_i32_0 = arith.constant 0 : i32
    %c0_i32_1 = arith.constant 0 : i32
    return %c0_i32, %c0_i32_0 : i32, i32
  }
  func.func @transform_3(%arg0: i32) -> (i32, i32) {
    %c0_i32 = arith.constant 0 : i32
    %c0_i32_0 = arith.constant 0 : i32
    %c0_i32_1 = arith.constant 0 : i32
    return %c0_i32, %c0_i32_0 : i32, i32
  }
  func.func @transform_4(%arg0: i32) -> (i32, i32, i32) {
    %c0_i32 = arith.constant 0 : i32
    %c0_i32_0 = arith.constant 0 : i32
    %c0_i32_1 = arith.constant 0 : i32
    %c0_i32_2 = arith.constant 0 : i32
    return %c0_i32, %c0_i32_0, %c0_i32_1 : i32, i32, i32
  }
  func.func @transform_5(%arg0: i32) -> (i32, i32, i32) {
    %c0_i32 = arith.constant 0 : i32
    %c0_i32_0 = arith.constant 0 : i32
    %c0_i32_1 = arith.constant 0 : i32
    %c0_i32_2 = arith.constant 0 : i32
    return %c0_i32, %c0_i32_0, %c0_i32_1 : i32, i32, i32
  }
  func.func @transform_6(%arg0: i32) -> (i32, i32) {
    %c0_i32 = arith.constant 0 : i32
    %c0_i32_0 = arith.constant 0 : i32
    %c0_i32_1 = arith.constant 0 : i32
    return %c0_i32, %c0_i32_0 : i32, i32
  }
  func.func @transform_7(%arg0: i32) -> (i32, i32) {
    %c0_i32 = arith.constant 0 : i32
    %c0_i32_0 = arith.constant 0 : i32
    %c0_i32_1 = arith.constant 0 : i32
    return %c0_i32, %c0_i32_0 : i32, i32
  }
}

</mosaic_0001>

<llo_original>
// kernel: tpu_custom_call.1
$region0: #{tpu_custom_call.1}
  #allocation0 [shape = 'u32[]', space=smem, size = 0x4, offset = 0x4, fixed_abs, tag = 'smem constant byte address 0x4 - core index']
  #allocation1 [shape = 'u32[144,128]{1,0:T(1,128)}', space=vmem, size = 0x12000, scoped, tag = 'internal scratch']
  %s0 = inlined_call_operand.hbm [shape: bf16[4,512], index: 0, kind: input, shape index: {}]
  %s1 = inlined_call_operand.hbm [shape: bf16[4,512], index: 1, kind: input, shape index: {}]
  %s2 = inlined_call_operand.vmem [shape: bf16[16,512], index: 2, kind: input, shape index: {}]
  %s3 = inlined_call_operand.hbm [shape: bf16[4,256], index: 3, kind: input, shape index: {}]
  %s4 = inlined_call_operand.vmem [shape: bf16[5,32,32], index: 4, kind: input, shape index: {}]
  %s5 = inlined_call_operand.vmem [shape: f32[3,32,1], index: 5, kind: input, shape index: {}]
  %s6 = inlined_call_operand.hbm [shape: f32[4,512], index: 6, kind: output, shape index: {0}]
  %s7 = inlined_call_operand.hbm [shape: f32[5,512], index: 7, kind: output, shape index: {1}]
  %8 = xla_tuple %s6, %s7
  %s9 = sld [smem:[#allocation0]]
  $region54: #{tpu_custom_call.1} parent=0
    _
  %s11 = ssub.s32 1, %s9
  %s12 = scalar_select 0, %s11, %s9
  $region1: #{tpu_custom_call.1} parent=0
    #allocation2 [shape = 'u8[4096]{0}', space=vmem, size = 0x1000, scoped, tag = 'input window, operand 0, single buffered']
    #allocation3 [shape = 's32[1]{0}', space=sflag, size = 0x4, scoped, tag = 'scoped memory for tpu_custom_call.1']
    #allocation4 [shape = 's32[1]{0}', space=sflag, size = 0x4, scoped, tag = 'scoped memory for tpu_custom_call.1']
    #allocation5 [shape = 'u8[4096]{0}', space=vmem, size = 0x1000, scoped, tag = 'input window, operand 1, single buffered']
    #allocation6 [shape = 's32[1]{0}', space=sflag, size = 0x4, scoped, tag = 'scoped memory for tpu_custom_call.1']
    #allocation7 [shape = 'u8[2048]{0}', space=vmem, size = 0x800, scoped, tag = 'input window, operand 3, single buffered']
    #allocation8 [shape = 'u8[8192]{0}', space=vmem, size = 0x2000, scoped, tag = 'output window, operand 0, single buffered']
    #allocation9 [shape = 'u8[16384]{0}', space=vmem, size = 0x4000, scoped, tag = 'output window, operand 1, single buffered']
    #allocation10 [shape = 's32[1]{0}', space=sflag, size = 0x4, scoped, tag = 'scoped memory for tpu_custom_call.1']
    %13 = vsyncpa [#allocation3], 0
    %14 = vsyncpa [#allocation6], 0
    %15 = vsyncpa [#allocation4], 0
    %16 = vsyncpa [#allocation10], 0
    // Predicated region
    $region2: #{tpu_custom_call.1} parent=1 // pred_check
      _
    $region3: #{tpu_custom_call.1} parent=1 // pred_check_branch
      %18 = sbr.rel (0) target = $region5
    $region4: #{tpu_custom_call.1} parent=1 // pred_region
      %s20 = ssub.s32 128, 128
      %21 = vsyncadd [#allocation3], %s20
      %s23 = sshll.u32 [#allocation2], 4
      %s24 = int_to_ptr.vmem [resolvable:$true] %s23
      %26 = dma.hbm_to_vmem [thread:$0]  %s0, 128, %s24, [#allocation3]
    $region5: #{tpu_custom_call.1} parent=1 // pred_fallthru
      _
    // Predicated region
    $region6: #{tpu_custom_call.1} parent=1 // pred_check
      _
    $region7: #{tpu_custom_call.1} parent=1 // pred_check_branch
      %28 = sbr.rel (0) target = $region9
    $region8: #{tpu_custom_call.1} parent=1 // pred_region
      %s30 = ssub.s32 128, 128
      %31 = vsyncadd [#allocation6], %s30
      %s33 = sshll.u32 [#allocation5], 4
      %s34 = int_to_ptr.vmem [resolvable:$true] %s33
      %36 = dma.hbm_to_vmem [thread:$0]  %s1, 128, %s34, [#allocation6]
    $region9: #{tpu_custom_call.1} parent=1 // pred_fallthru
      _
    // Predicated region
    $region10: #{tpu_custom_call.1} parent=1 // pred_check
      _
    $region11: #{tpu_custom_call.1} parent=1 // pred_check_branch
      %38 = sbr.rel (0) target = $region13
    $region12: #{tpu_custom_call.1} parent=1 // pred_region
      _
    $region13: #{tpu_custom_call.1} parent=1 // pred_fallthru
      _
    // Predicated region
    $region14: #{tpu_custom_call.1} parent=1 // pred_check
      _
    $region15: #{tpu_custom_call.1} parent=1 // pred_check_branch
      %40 = sbr.rel (0) target = $region17
    $region16: #{tpu_custom_call.1} parent=1 // pred_region
      %s42 = ssub.s32 64, 64
      %43 = vsyncadd [#allocation6], %s42
      %s45 = sshll.u32 [#allocation7], 4
      %s46 = int_to_ptr.vmem [resolvable:$true] %s45
      %48 = dma.hbm_to_vmem [thread:$0]  %s3, 64, %s46, [#allocation6]
    $region17: #{tpu_custom_call.1} parent=1 // pred_fallthru
      _
    // Predicated region
    $region18: #{tpu_custom_call.1} parent=1 // pred_check
      _
    $region19: #{tpu_custom_call.1} parent=1 // pred_check_branch
      %50 = sbr.rel (0) target = $region21
    $region20: #{tpu_custom_call.1} parent=1 // pred_region
      _
    $region21: #{tpu_custom_call.1} parent=1 // pred_fallthru
      _
    // Predicated region
    $region22: #{tpu_custom_call.1} parent=1 // pred_check
      _
    $region23: #{tpu_custom_call.1} parent=1 // pred_check_branch
      %52 = sbr.rel (0) target = $region25
    $region24: #{tpu_custom_call.1} parent=1 // pred_region
      _
    $region25: #{tpu_custom_call.1} parent=1 // pred_fallthru
      _
    // Predicated region
    $region26: #{tpu_custom_call.1} parent=1 // pred_check
      _
    $region27: #{tpu_custom_call.1} parent=1 // pred_check_branch
      %54 = sbr.rel (0) target = $region29
    $region28: #{tpu_custom_call.1} parent=1 // pred_region
      %55 = dma.done [#allocation3], 128
    $region29: #{tpu_custom_call.1} parent=1 // pred_fallthru
      _
    // Predicated region
    $region30: #{tpu_custom_call.1} parent=1 // pred_check
      _
    $region31: #{tpu_custom_call.1} parent=1 // pred_check_branch
      %57 = sbr.rel (0) target = $region33
    $region32: #{tpu_custom_call.1} parent=1 // pred_region
      %58 = dma.done [#allocation6], 128
    $region33: #{tpu_custom_call.1} parent=1 // pred_fallthru
      _
    // Predicated region
    $region34: #{tpu_custom_call.1} parent=1 // pred_check
      _
    $region35: #{tpu_custom_call.1} parent=1 // pred_check_branch
      %60 = sbr.rel (0) target = $region37
    $region36: #{tpu_custom_call.1} parent=1 // pred_region
      %61 = dma.done [#allocation6], 64
    $region37: #{tpu_custom_call.1} parent=1 // pred_fallthru
      _
    %v63 = vld [vmem:[#allocation2] sm:$0xff]
    %v64 = vld [vmem:[#allocation5] sm:$0xff]
    %v65 = vld [vmem:[#allocation7] sm:$0xf]
    %v66 = vld [vmem:[%s4] sm:$0xf]
    %v67 = vld [vmem:[%s4 + $0x4] sm:$0xf]
    %v68 = vld [vmem:[%s4 + $0x8] sm:$0xf]
    %v69 = vld [vmem:[%s4 + $0xc] sm:$0xf]
    %s70 = scalar_lea.vmem %s4, 16
    %v71 = vld [vmem:[%s70] sm:$0xf]
    %v72 = vld [vmem:[%s70 + $0x4] sm:$0xf]
    %v73 = vld [vmem:[%s70 + $0x8] sm:$0xf]
    %v74 = vld [vmem:[%s70 + $0xc] sm:$0xf]
    %s75 = scalar_lea.vmem %s4, 32
    %v76 = vld [vmem:[%s75] sm:$0xf]
    %v77 = vld [vmem:[%s75 + $0x4] sm:$0xf]
    %v78 = vld [vmem:[%s75 + $0x8] sm:$0xf]
    %v79 = vld [vmem:[%s75 + $0xc] sm:$0xf]
    %v80 = vld [vmem:[%s5] sm:$0xff]
    %v81 = vld [vmem:[%s5 + $0x8] sm:$0xff]
    %v82 = vld [vmem:[%s5 + $0x10] sm:$0xff]
    %v83 = vld [vmem:[%s5 + $0x18] sm:$0xff]
    %v88 = vunpack.c.l.b16 %v71
    %v89 = vunpack.c.l.b16 %v72
    %v90 = vunpack.c.l.b16 %v73
    %v91 = vunpack.c.l.b16 %v74
    %v92 = vpack.c.b16 %v89, %v88
    %v93 = vpack.c.b16 %v91, %v90
    %v95 = vcombine.high %v64, %v64
    %v97 = vunpack.c.l.s4 1983009808
    %v98 = vunpack.c.0.s8 %v97
    %v99 = vlaneseq
    %v100 = vshrl.u32 %v99, 7
    %v101 = vsub.s32 %v98, %v100
    %v102 = vrot.slane %v64, %v101
    %v104 = vunpack.c.l.s4 1983009808
    %v105 = vunpack.c.0.s8 %v104
    %v106 = vlaneseq
    %v107 = vshrl.u32 %v106, 7
    %v108 = vsub.s32 %v105, %v107
    %v109 = vrot.slane %v95, %v108
    %v110 = vcombine.high %v102, %v102
    %v111 = vcombine.high %v109, %v109
    %vm112 = vcmask 31744
    %v114 = vsel %vm112, %v92, 0
    %v117 = vsel %vm112, %v93, 0
    %vm119 = vcmask 1041408
    %v121 = vsel %vm119, %v102, 0
    %v124 = vsel %vm119, %v110, 0
    %v127 = vsel %vm119, %v109, 0
    %v130 = vsel %vm119, %v111, 0
    %132 = vmatprep.subr.bf16.mxu0 %v124
    %133 = vmatpush1.bf16.msra.mxu0 %v121
    %134 = vmatprep.subr.bf16.mxu0 0
    %135 = vmatpush1.bf16.msra.mxu0 0
    %136 = vmatprep.subr.bf16.mxu0 0
    %137 = vmatpush1.bf16.msra.mxu0 0
    %138 = vmatprep.subr.bf16.mxu0 0
    %139 = vmatpush1.bf16.msra.mxu0 0
    %140 = vmatprep.subr.bf16.mxu0 0
    %141 = vmatpush1.bf16.msra.mxu0 0
    %142 = vmatprep.subr.bf16.mxu0 0
    %143 = vmatpush1.bf16.msra.mxu0 0
    %144 = vmatprep.subr.bf16.mxu0 0
    %145 = vmatpush1.bf16.msra.mxu0 0
    %146 = vmatprep.subr.bf16.mxu0 0
    %147 = vmatpush1.bf16.msra.mxu0 0
    %148 = vmatprep.subr.bf16.mxu0 0
    %149 = vmatpush1.bf16.msra.mxu0 0
    %150 = vmatprep.subr.bf16.mxu0 0
    %151 = vmatpush1.bf16.msra.mxu0 0
    %152 = vmatprep.subr.bf16.mxu0 0
    %153 = vmatpush1.bf16.msra.mxu0 0
    %154 = vmatprep.subr.bf16.mxu0 0
    %155 = vmatpush1.bf16.msra.mxu0 0
    %156 = vmatprep.subr.bf16.mxu0 0
    %157 = vmatpush1.bf16.msra.mxu0 0
    %158 = vmatprep.subr.bf16.mxu0 0
    %159 = vmatpush1.bf16.msra.mxu0 0
    %160 = vmatprep.subr.bf16.mxu0 0
    %161 = vmatpush1.bf16.msra.mxu0 0
    %162 = vmatprep.subr.bf16.mxu0 0
    %163 = vmatpush1.bf16.msra.mxu0 0
    %164 = vmatprep.mubr.bf16.mxu0 0
    %165 = vmatmul.mubr.bf16.gmra.mrb[0].mxu0 %v114
    %v166 = vpop.f32.mrb[0].mxu0
    %v167 = vadd.f32 0.0, %v166
    %v168 = vpop.f32.mrb[0].mxu0
    %v169 = vadd.f32 0.0, %v168
    %v170 = vpop.f32.mrb[0].mxu0
    %v171 = vadd.f32 0.0, %v170
    %v172 = vpop.f32.mrb[0].mxu0
    %v173 = vadd.f32 0.0, %v172
    %174 = vmatprep.mubr.bf16.mxu0 0
    %175 = vmatmul.mubr.bf16.gmra.mrb[0].mxu0 %v117
    %v176 = vpop.f32.mrb[0].mxu0
    %v177 = vadd.f32 0.0, %v176
    %v178 = vpop.f32.mrb[0].mxu0
    %v179 = vadd.f32 0.0, %v178
    %v180 = vpop.f32.mrb[0].mxu0
    %v181 = vadd.f32 0.0, %v180
    %v182 = vpop.f32.mrb[0].mxu0
    %v183 = vadd.f32 0.0, %v182
    %184 = vdwg.mxu0
    %185 = vmatprep.subr.bf16.mxu0 %v130
    %186 = vmatpush1.bf16.msra.mxu0 %v127
    %187 = vmatprep.subr.bf16.mxu0 0
    %188 = vmatpush1.bf16.msra.mxu0 0
    %189 = vmatprep.subr.bf16.mxu0 0
    %190 = vmatpush1.bf16.msra.mxu0 0
    %191 = vmatprep.subr.bf16.mxu0 0
    %192 = vmatpush1.bf16.msra.mxu0 0
    %193 = vmatprep.subr.bf16.mxu0 0
    %194 = vmatpush1.bf16.msra.mxu0 0
    %195 = vmatprep.subr.bf16.mxu0 0
    %196 = vmatpush1.bf16.msra.mxu0 0
    %197 = vmatprep.subr.bf16.mxu0 0
    %198 = vmatpush1.bf16.msra.mxu0 0
    %199 = vmatprep.subr.bf16.mxu0 0
    %200 = vmatpush1.bf16.msra.mxu0 0
    %201 = vmatprep.subr.bf16.mxu0 0
    %202 = vmatpush1.bf16.msra.mxu0 0
    %203 = vmatprep.subr.bf16.mxu0 0
    %204 = vmatpush1.bf16.msra.mxu0 0
    %205 = vmatprep.subr.bf16.mxu0 0
    %206 = vmatpush1.bf16.msra.mxu0 0
    %207 = vmatprep.subr.bf16.mxu0 0
    %208 = vmatpush1.bf16.msra.mxu0 0
    %209 = vmatprep.subr.bf16.mxu0 0
    %210 = vmatpush1.bf16.msra.mxu0 0
    %211 = vmatprep.subr.bf16.mxu0 0
    %212 = vmatpush1.bf16.msra.mxu0 0
    %213 = vmatprep.subr.bf16.mxu0 0
    %214 = vmatpush1.bf16.msra.mxu0 0
    %215 = vmatprep.subr.bf16.mxu0 0
    %216 = vmatpush1.bf16.msra.mxu0 0
    %217 = vmatprep.mubr.bf16.mxu0 0
    %218 = vmatmul.mubr.bf16.gmra.mrb[0].mxu0 %v114
    %v219 = vpop.f32.mrb[0].mxu0
    %v220 = vadd.f32 0.0, %v219
    %v221 = vpop.f32.mrb[0].mxu0
    %v222 = vadd.f32 0.0, %v221
    %v223 = vpop.f32.mrb[0].mxu0
    %v224 = vadd.f32 0.0, %v223
    %v225 = vpop.f32.mrb[0].mxu0
    %v226 = vadd.f32 0.0, %v225
    %227 = vmatprep.mubr.bf16.mxu0 0
    %228 = vmatmul.mubr.bf16.gmra.mrb[0].mxu0 %v117
    %v229 = vpop.f32.mrb[0].mxu0
    %v230 = vadd.f32 0.0, %v229
    %v231 = vpop.f32.mrb[0].mxu0
    %v232 = vadd.f32 0.0, %v231
    %v233 = vpop.f32.mrb[0].mxu0
    %v234 = vadd.f32 0.0, %v233
    %v235 = vpop.f32.mrb[0].mxu0
    %v236 = vadd.f32 0.0, %v235
    %237 = vdwg.mxu0
    %v242 = vunpack.c.l.b16 %v66
    %v243 = vunpack.c.l.b16 %v67
    %v244 = vunpack.c.l.b16 %v68
    %v245 = vunpack.c.l.b16 %v69
    %v246 = vpack.c.b16 %v243, %v242
    %v247 = vpack.c.b16 %v245, %v244
    %v249 = vcombine.high %v63, %v63
    %v251 = vunpack.c.l.s4 1983009808
    %v252 = vunpack.c.0.s8 %v251
    %v253 = vlaneseq
    %v254 = vshrl.u32 %v253, 7
    %v255 = vsub.s32 %v252, %v254
    %v256 = vrot.slane %v63, %v255
    %v258 = vunpack.c.l.s4 1983009808
    %v259 = vunpack.c.0.s8 %v258
    %v260 = vlaneseq
    %v261 = vshrl.u32 %v260, 7
    %v262 = vsub.s32 %v259, %v261
    %v263 = vrot.slane %v249, %v262
    %v264 = vcombine.high %v256, %v256
    %v265 = vcombine.high %v263, %v263
    %v267 = vsel %vm112, %v246, 0
    %v270 = vsel %vm112, %v247, 0
    %v273 = vsel %vm119, %v256, 0
    %v276 = vsel %vm119, %v264, 0
    %v279 = vsel %vm119, %v263, 0
    %v282 = vsel %vm119, %v265, 0
    %284 = vmatprep.subr.bf16.mxu0 %v276
    %285 = vmatpush1.bf16.msra.mxu0 %v273
    %286 = vmatprep.subr.bf16.mxu0 0
    %287 = vmatpush1.bf16.msra.mxu0 0
    %288 = vmatprep.subr.bf16.mxu0 0
    %289 = vmatpush1.bf16.msra.mxu0 0
    %290 = vmatprep.subr.bf16.mxu0 0
    %291 = vmatpush1.bf16.msra.mxu0 0
    %292 = vmatprep.subr.bf16.mxu0 0
    %293 = vmatpush1.bf16.msra.mxu0 0
    %294 = vmatprep.subr.bf16.mxu0 0
    %295 = vmatpush1.bf16.msra.mxu0 0
    %296 = vmatprep.subr.bf16.mxu0 0
    %297 = vmatpush1.bf16.msra.mxu0 0
    %298 = vmatprep.subr.bf16.mxu0 0
    %299 = vmatpush1.bf16.msra.mxu0 0
    %300 = vmatprep.subr.bf16.mxu0 0
    %301 = vmatpush1.bf16.msra.mxu0 0
    %302 = vmatprep.subr.bf16.mxu0 0
    %303 = vmatpush1.bf16.msra.mxu0 0
    %304 = vmatprep.subr.bf16.mxu0 0
    %305 = vmatpush1.bf16.msra.mxu0 0
    %306 = vmatprep.subr.bf16.mxu0 0
    %307 = vmatpush1.bf16.msra.mxu0 0
    %308 = vmatprep.subr.bf16.mxu0 0
    %309 = vmatpush1.bf16.msra.mxu0 0
    %310 = vmatprep.subr.bf16.mxu0 0
    %311 = vmatpush1.bf16.msra.mxu0 0
    %312 = vmatprep.subr.bf16.mxu0 0
    %313 = vmatpush1.bf16.msra.mxu0 0
    %314 = vmatprep.subr.bf16.mxu0 0
    %315 = vmatpush1.bf16.msra.mxu0 0
    %316 = vmatprep.mubr.bf16.mxu0 0
    %317 = vmatmul.mubr.bf16.gmra.mrb[0].mxu0 %v267
    %v318 = vpop.f32.mrb[0].mxu0
    %v319 = vadd.f32 %v167, %v318
    %v320 = vpop.f32.mrb[0].mxu0
    %v321 = vadd.f32 %v169, %v320
    %v322 = vpop.f32.mrb[0].mxu0
    %v323 = vadd.f32 %v171, %v322
    %v324 = vpop.f32.mrb[0].mxu0
    %v325 = vadd.f32 %v173, %v324
    %326 = vmatprep.mubr.bf16.mxu0 0
    %327 = vmatmul.mubr.bf16.gmra.mrb[0].mxu0 %v270
    %v328 = vpop.f32.mrb[0].mxu0
    %v329 = vadd.f32 %v177, %v328
    %v330 = vpop.f32.mrb[0].mxu0
    %v331 = vadd.f32 %v179, %v330
    %v332 = vpop.f32.mrb[0].mxu0
    %v333 = vadd.f32 %v181, %v332
    %v334 = vpop.f32.mrb[0].mxu0
    %v335 = vadd.f32 %v183, %v334
    %336 = vdwg.mxu0
    %337 = vmatprep.subr.bf16.mxu0 %v282
    %338 = vmatpush1.bf16.msra.mxu0 %v279
    %339 = vmatprep.subr.bf16.mxu0 0
    %340 = vmatpush1.bf16.msra.mxu0 0
    %341 = vmatprep.subr.bf16.mxu0 0
    %342 = vmatpush1.bf16.msra.mxu0 0
    %343 = vmatprep.subr.bf16.mxu0 0
    %344 = vmatpush1.bf16.msra.mxu0 0
    %345 = vmatprep.subr.bf16.mxu0 0
    %346 = vmatpush1.bf16.msra.mxu0 0
    %347 = vmatprep.subr.bf16.mxu0 0
    %348 = vmatpush1.bf16.msra.mxu0 0
    %349 = vmatprep.subr.bf16.mxu0 0
    %350 = vmatpush1.bf16.msra.mxu0 0
    %351 = vmatprep.subr.bf16.mxu0 0
    %352 = vmatpush1.bf16.msra.mxu0 0
    %353 = vmatprep.subr.bf16.mxu0 0
    %354 = vmatpush1.bf16.msra.mxu0 0
    %355 = vmatprep.subr.bf16.mxu0 0
    %356 = vmatpush1.bf16.msra.mxu0 0
    %357 = vmatprep.subr.bf16.mxu0 0
    %358 = vmatpush1.bf16.msra.mxu0 0
    %359 = vmatprep.subr.bf16.mxu0 0
    %360 = vmatpush1.bf16.msra.mxu0 0
    %361 = vmatprep.subr.bf16.mxu0 0
    %362 = vmatpush1.bf16.msra.mxu0 0
    %363 = vmatprep.subr.bf16.mxu0 0
    %364 = vmatpush1.bf16.msra.mxu0 0
    %365 = vmatprep.subr.bf16.mxu0 0
    %366 = vmatpush1.bf16.msra.mxu0 0
    %367 = vmatprep.subr.bf16.mxu0 0
    %368 = vmatpush1.bf16.msra.mxu0 0
    %369 = vmatprep.mubr.bf16.mxu0 0
    %370 = vmatmul.mubr.bf16.gmra.mrb[0].mxu0 %v267
    %v371 = vpop.f32.mrb[0].mxu0
    %v372 = vadd.f32 %v220, %v371
    %v373 = vpop.f32.mrb[0].mxu0
    %v374 = vadd.f32 %v222, %v373
    %v375 = vpop.f32.mrb[0].mxu0
    %v376 = vadd.f32 %v224, %v375
    %v377 = vpop.f32.mrb[0].mxu0
    %v378 = vadd.f32 %v226, %v377
    %379 = vmatprep.mubr.bf16.mxu0 0
    %380 = vmatmul.mubr.bf16.gmra.mrb[0].mxu0 %v270
    %v381 = vpop.f32.mrb[0].mxu0
    %v382 = vadd.f32 %v230, %v381
    %v383 = vpop.f32.mrb[0].mxu0
    %v384 = vadd.f32 %v232, %v383
    %v385 = vpop.f32.mrb[0].mxu0
    %v386 = vadd.f32 %v234, %v385
    %v387 = vpop.f32.mrb[0].mxu0
    %v388 = vadd.f32 %v236, %v387
    %389 = vdwg.mxu0
    %391 = vset.pattern.permute.xlu0 0
    %392 = vperm.xlu0 %391, %v80
    %v393 = vpop.permute.xlu0 %392
    %396 = vset.pattern.permute.xlu0 0
    %397 = vperm.xlu0 %396, %v81
    %v398 = vpop.permute.xlu0 %397
    %401 = vset.pattern.permute.xlu0 0
    %402 = vperm.xlu0 %401, %v82
    %v403 = vpop.permute.xlu0 %402
    %406 = vset.pattern.permute.xlu0 0
    %407 = vperm.xlu0 %406, %v83
    %v408 = vpop.permute.xlu0 %407
    %v410 = vadd.f32 %v319, %v393
    %v411 = vadd.f32 %v321, %v393
    %v412 = vadd.f32 %v372, %v393
    %v413 = vadd.f32 %v374, %v393
    %v414 = vadd.f32 %v323, %v398
    %v415 = vadd.f32 %v325, %v398
    %v416 = vadd.f32 %v376, %v398
    %v417 = vadd.f32 %v378, %v398
    %v418 = vadd.f32 %v329, %v403
    %v419 = vadd.f32 %v331, %v403
    %v420 = vadd.f32 %v382, %v403
    %v421 = vadd.f32 %v384, %v403
    %v422 = vadd.f32 %v333, %v408
    %v423 = vadd.f32 %v335, %v408
    %v424 = vadd.f32 %v386, %v408
    %v425 = vadd.f32 %v388, %v408
    %v430 = vunpack.c.l.b16 %v76
    %v431 = vunpack.c.l.b16 %v77
    %v432 = vunpack.c.l.b16 %v78
    %v433 = vunpack.c.l.b16 %v79
    %v434 = vpack.c.b16 %v431, %v430
    %v435 = vpack.c.b16 %v433, %v432
    %v438 = vunpack.c.l.s4 1983009808
    %v439 = vunpack.c.0.s8 %v438
    %v440 = vlaneseq
    %v441 = vshrl.u32 %v440, 7
    %v442 = vsub.s32 %v439, %v441
    %v443 = vrot.slane %v65, %v442
    %v444 = vcombine.high %v443, %v443
    %v446 = vsel %vm112, %v434, 0
    %v449 = vsel %vm112, %v435, 0
    %v452 = vsel %vm119, %v443, 0
    %v455 = vsel %vm119, %v444, 0
    %457 = vmatprep.subr.bf16.mxu0 %v455
    %458 = vmatpush1.bf16.msra.mxu0 %v452
    %459 = vmatprep.subr.bf16.mxu0 0
    %460 = vmatpush1.bf16.msra.mxu0 0
    %461 = vmatprep.subr.bf16.mxu0 0
    %462 = vmatpush1.bf16.msra.mxu0 0
    %463 = vmatprep.subr.bf16.mxu0 0
    %464 = vmatpush1.bf16.msra.mxu0 0
    %465 = vmatprep.subr.bf16.mxu0 0
    %466 = vmatpush1.bf16.msra.mxu0 0
    %467 = vmatprep.subr.bf16.mxu0 0
    %468 = vmatpush1.bf16.msra.mxu0 0
    %469 = vmatprep.subr.bf16.mxu0 0
    %470 = vmatpush1.bf16.msra.mxu0 0
    %471 = vmatprep.subr.bf16.mxu0 0
    %472 = vmatpush1.bf16.msra.mxu0 0
    %473 = vmatprep.subr.bf16.mxu0 0
    %474 = vmatpush1.bf16.msra.mxu0 0
    %475 = vmatprep.subr.bf16.mxu0 0
    %476 = vmatpush1.bf16.msra.mxu0 0
    %477 = vmatprep.subr.bf16.mxu0 0
    %478 = vmatpush1.bf16.msra.mxu0 0
    %479 = vmatprep.subr.bf16.mxu0 0
    %480 = vmatpush1.bf16.msra.mxu0 0
    %481 = vmatprep.subr.bf16.mxu0 0
    %482 = vmatpush1.bf16.msra.mxu0 0
    %483 = vmatprep.subr.bf16.mxu0 0
    %484 = vmatpush1.bf16.msra.mxu0 0
    %485 = vmatprep.subr.bf16.mxu0 0
    %486 = vmatpush1.bf16.msra.mxu0 0
    %487 = vmatprep.subr.bf16.mxu0 0
    %488 = vmatpush1.bf16.msra.mxu0 0
    %489 = vmatprep.mubr.bf16.mxu0 0
    %490 = vmatmul.mubr.bf16.gmra.mrb[0].mxu0 %v446
    %v491 = vpop.f32.mrb[0].mxu0
    %v492 = vadd.f32 0.0, %v491
    %v493 = vpop.f32.mrb[0].mxu0
    %v494 = vadd.f32 0.0, %v493
    %v495 = vpop.f32.mrb[0].mxu0
    %v496 = vadd.f32 0.0, %v495
    %v497 = vpop.f32.mrb[0].mxu0
    %v498 = vadd.f32 0.0, %v497
    %499 = vmatprep.mubr.bf16.mxu0 0
    %500 = vmatmul.mubr.bf16.gmra.mrb[0].mxu0 %v449
    %v501 = vpop.f32.mrb[0].mxu0
    %v502 = vadd.f32 0.0, %v501
    %v503 = vpop.f32.mrb[0].mxu0
    %v504 = vadd.f32 0.0, %v503
    %v505 = vpop.f32.mrb[0].mxu0
    %v506 = vadd.f32 0.0, %v505
    %v507 = vpop.f32.mrb[0].mxu0
    %v508 = vadd.f32 0.0, %v507
    %509 = vdwg.mxu0
    %v510 = vadd.f32 %v410, %v492
    %v511 = vadd.f32 %v411, %v494
    %v512 = vadd.f32 %v412, %v492
    %v513 = vadd.f32 %v413, %v494
    %v514 = vadd.f32 %v414, %v496
    %v515 = vadd.f32 %v415, %v498
    %v516 = vadd.f32 %v416, %v496
    %v517 = vadd.f32 %v417, %v498
    %v518 = vadd.f32 %v418, %v502
    %v519 = vadd.f32 %v419, %v504
    %v520 = vadd.f32 %v420, %v502
    %v521 = vadd.f32 %v421, %v504
    %v522 = vadd.f32 %v422, %v506
    %v523 = vadd.f32 %v423, %v508
    %v524 = vadd.f32 %v424, %v506
    %v525 = vadd.f32 %v425, %v508
    %v526 = vadd.f32 %v510, %v511
    %527 = vadd.xlane.f32.xlu0 %v526
    %v528 = vpop.xlane.xlu0 %527
    %v529 = vadd.f32 %v514, %v515
    %530 = vadd.xlane.f32.xlu0 %v529
    %v531 = vpop.xlane.xlu0 %530
    %v532 = vadd.f32 %v518, %v519
    %533 = vadd.xlane.f32.xlu0 %v532
    %v534 = vpop.xlane.xlu0 %533
    %v535 = vadd.f32 %v522, %v523
    %536 = vadd.xlane.f32.xlu0 %v535
    %v537 = vpop.xlane.xlu0 %536
    %v538 = vrcp.pop 256.0
    %v539 = vmul.f32 %v528, %v538
    %v540 = vmul.f32 %v531, %v538
    %v541 = vmul.f32 %v534, %v538
    %v542 = vmul.f32 %v537, %v538
    %v543 = vsub.f32 %v510, %v539
    %v544 = vsub.f32 %v511, %v539
    %v545 = vsub.f32 %v514, %v540
    %v546 = vsub.f32 %v515, %v540
    %v547 = vsub.f32 %v518, %v541
    %v548 = vsub.f32 %v519, %v541
    %v549 = vsub.f32 %v522, %v542
    %v550 = vsub.f32 %v523, %v542
    %v551 = vmul.f32 %v543, %v543
    %v552 = vmul.f32 %v544, %v544
    %v553 = vmul.f32 %v545, %v545
    %v554 = vmul.f32 %v546, %v546
    %v555 = vmul.f32 %v547, %v547
    %v556 = vmul.f32 %v548, %v548
    %v557 = vmul.f32 %v549, %v549
    %v558 = vmul.f32 %v550, %v550
    %v559 = vadd.f32 %v551, %v552
    %560 = vadd.xlane.f32.xlu0 %v559
    %v561 = vpop.xlane.xlu0 %560
    %v562 = vadd.f32 %v553, %v554
    %563 = vadd.xlane.f32.xlu0 %v562
    %v564 = vpop.xlane.xlu0 %563
    %v565 = vadd.f32 %v555, %v556
    %566 = vadd.xlane.f32.xlu0 %v565
    %v567 = vpop.xlane.xlu0 %566
    %v568 = vadd.f32 %v557, %v558
    %569 = vadd.xlane.f32.xlu0 %v568
    %v570 = vpop.xlane.xlu0 %569
    %v571 = vmul.f32 %v561, %v538
    %v572 = vmul.f32 %v564, %v538
    %v573 = vmul.f32 %v567, %v538
    %v574 = vmul.f32 %v570, %v538
    %v575 = vadd.f32 %v571, 1e-05
    %v576 = vadd.f32 %v572, 1e-05
    %v577 = vadd.f32 %v573, 1e-05
    %v578 = vadd.f32 %v574, 1e-05
    %v579 = vrsqrt.pop %v575
    %v580 = vrsqrt.pop %v576
    %v581 = vrsqrt.pop %v577
    %v582 = vrsqrt.pop %v578
    %v583 = vmul.f32 %v543, %v579
    %v584 = vmul.f32 %v544, %v579
    %v585 = vmul.f32 %v545, %v580
    %v586 = vmul.f32 %v546, %v580
    %v587 = vmul.f32 %v547, %v581
    %v588 = vmul.f32 %v548, %v581
    %v589 = vmul.f32 %v549, %v582
    %v590 = vmul.f32 %v550, %v582
    %v591 = vmax.f32 %v583, 0.0
    %v592 = vmax.f32 %v584, 0.0
    %v593 = vmax.f32 %v585, 0.0
    %v594 = vmax.f32 %v586, 0.0
    %v595 = vmax.f32 %v587, 0.0
    %v596 = vmax.f32 %v588, 0.0
    %v597 = vmax.f32 %v589, 0.0
    %v598 = vmax.f32 %v590, 0.0
    %v599 = vadd.f32 %v512, %v513
    %600 = vadd.xlane.f32.xlu0 %v599
    %v601 = vpop.xlane.xlu0 %600
    %v602 = vadd.f32 %v516, %v517
    %603 = vadd.xlane.f32.xlu0 %v602
    %v604 = vpop.xlane.xlu0 %603
    %v605 = vadd.f32 %v520, %v521
    %606 = vadd.xlane.f32.xlu0 %v605
    %v607 = vpop.xlane.xlu0 %606
    %v608 = vadd.f32 %v524, %v525
    %609 = vadd.xlane.f32.xlu0 %v608
    %v610 = vpop.xlane.xlu0 %609
    %v611 = vmul.f32 %v601, %v538
    %v612 = vmul.f32 %v604, %v538
    %v613 = vmul.f32 %v607, %v538
    %v614 = vmul.f32 %v610, %v538
    %v615 = vsub.f32 %v512, %v611
    %v616 = vsub.f32 %v513, %v611
    %v617 = vsub.f32 %v516, %v612
    %v618 = vsub.f32 %v517, %v612
    %v619 = vsub.f32 %v520, %v613
    %v620 = vsub.f32 %v521, %v613
    %v621 = vsub.f32 %v524, %v614
    %v622 = vsub.f32 %v525, %v614
    %v623 = vmul.f32 %v615, %v615
    %v624 = vmul.f32 %v616, %v616
    %v625 = vmul.f32 %v617, %v617
    %v626 = vmul.f32 %v618, %v618
    %v627 = vmul.f32 %v619, %v619
    %v628 = vmul.f32 %v620, %v620
    %v629 = vmul.f32 %v621, %v621
    %v630 = vmul.f32 %v622, %v622
    %v631 = vadd.f32 %v623, %v624
    %632 = vadd.xlane.f32.xlu0 %v631
    %v633 = vpop.xlane.xlu0 %632
    %v634 = vadd.f32 %v625, %v626
    %635 = vadd.xlane.f32.xlu0 %v634
    %v636 = vpop.xlane.xlu0 %635
    %v637 = vadd.f32 %v627, %v628
    %638 = vadd.xlane.f32.xlu0 %v637
    %v639 = vpop.xlane.xlu0 %638
    %v640 = vadd.f32 %v629, %v630
    %641 = vadd.xlane.f32.xlu0 %v640
    %v642 = vpop.xlane.xlu0 %641
    %v643 = vmul.f32 %v633, %v538
    %v644 = vmul.f32 %v636, %v538
    %v645 = vmul.f32 %v639, %v538
    %v646 = vmul.f32 %v642, %v538
    %v647 = vadd.f32 %v643, 1e-05
    %v648 = vadd.f32 %v644, 1e-05
    %v649 = vadd.f32 %v645, 1e-05
    %v650 = vadd.f32 %v646, 1e-05
    %v651 = vrsqrt.pop %v647
    %v652 = vrsqrt.pop %v648
    %v653 = vrsqrt.pop %v649
    %v654 = vrsqrt.pop %v650
    %v655 = vmul.f32 %v615, %v651
    %v656 = vmul.f32 %v616, %v651
    %v657 = vmul.f32 %v617, %v652
    %v658 = vmul.f32 %v618, %v652
    %v659 = vmul.f32 %v619, %v653
    %v660 = vmul.f32 %v620, %v653
    %v661 = vmul.f32 %v621, %v654
    %v662 = vmul.f32 %v622, %v654
    %v663 = vmax.f32 %v655, 0.0
    %v664 = vmax.f32 %v656, 0.0
    %v665 = vmax.f32 %v657, 0.0
    %v666 = vmax.f32 %v658, 0.0
    %v667 = vmax.f32 %v659, 0.0
    %v668 = vmax.f32 %v660, 0.0
    %v669 = vmax.f32 %v661, 0.0
    %v670 = vmax.f32 %v662, 0.0
    %s671 = scalar_lea.vmem %s4, 48
    %v672 = vld [vmem:[%s671] sm:$0xf]
    %v673 = vld [vmem:[%s671 + $0x4] sm:$0xf]
    %v674 = vld [vmem:[%s671 + $0x8] sm:$0xf]
    %v675 = vld [vmem:[%s671 + $0xc] sm:$0xf]
    %s676 = scalar_lea.vmem %s5, 32
    %v677 = vld [vmem:[%s676] sm:$0xff]
    %v678 = vld [vmem:[%s676 + $0x8] sm:$0xff]
    %v679 = vld [vmem:[%s676 + $0x10] sm:$0xff]
    %v680 = vld [vmem:[%s676 + $0x18] sm:$0xff]
    %v681 = vpack.c.bf16 %v593, %v591
    %v682 = vpack.c.bf16 %v594, %v592
    %v683 = vpack.c.bf16 %v665, %v663
    %v684 = vpack.c.bf16 %v666, %v664
    %v685 = vpack.c.bf16 %v597, %v595
    %v686 = vpack.c.bf16 %v598, %v596
    %v687 = vpack.c.bf16 %v669, %v667
    %v688 = vpack.c.bf16 %v670, %v668
    %690 = vset.pattern.permute.xlu0 0
    %691 = vperm.xlu0 %690, %v677
    %v692 = vpop.permute.xlu0 %691
    %695 = vset.pattern.permute.xlu0 0
    %696 = vperm.xlu0 %695, %v678
    %v697 = vpop.permute.xlu0 %696
    %700 = vset.pattern.permute.xlu0 0
    %701 = vperm.xlu0 %700, %v679
    %v702 = vpop.permute.xlu0 %701
    %705 = vset.pattern.permute.xlu0 0
    %706 = vperm.xlu0 %705, %v680
    %v707 = vpop.permute.xlu0 %706
    %v713 = vunpack.c.l.b16 %v672
    %v714 = vunpack.c.l.b16 %v673
    %v715 = vunpack.c.l.b16 %v674
    %v716 = vunpack.c.l.b16 %v675
    %v717 = vpack.c.b16 %v714, %v713
    %v718 = vpack.c.b16 %v716, %v715
    %vm719 = vcmask 261120
    %v721 = vsel %vm719, %v717, 0
    %v724 = vsel %vm719, %v718, 0
    %726 = vmatprep.subr.bf16.mxu0 %v682
    %727 = vmatpush1.bf16.msra.mxu0 %v681
    %728 = vmatprep.subr.bf16.mxu0 %v686
    %729 = vmatpush1.bf16.msra.mxu0 %v685
    %730 = vmatprep.subr.bf16.mxu0 0
    %731 = vmatpush1.bf16.msra.mxu0 0
    %732 = vmatprep.subr.bf16.mxu0 0
    %733 = vmatpush1.bf16.msra.mxu0 0
    %734 = vmatprep.subr.bf16.mxu0 0
    %735 = vmatpush1.bf16.msra.mxu0 0
    %736 = vmatprep.subr.bf16.mxu0 0
    %737 = vmatpush1.bf16.msra.mxu0 0
    %738 = vmatprep.subr.bf16.mxu0 0
    %739 = vmatpush1.bf16.msra.mxu0 0
    %740 = vmatprep.subr.bf16.mxu0 0
    %741 = vmatpush1.bf16.msra.mxu0 0
    %742 = vmatprep.subr.bf16.mxu0 0
    %743 = vmatpush1.bf16.msra.mxu0 0
    %744 = vmatprep.subr.bf16.mxu0 0
    %745 = vmatpush1.bf16.msra.mxu0 0
    %746 = vmatprep.subr.bf16.mxu0 0
    %747 = vmatpush1.bf16.msra.mxu0 0
    %748 = vmatprep.subr.bf16.mxu0 0
    %749 = vmatpush1.bf16.msra.mxu0 0
    %750 = vmatprep.subr.bf16.mxu0 0
    %751 = vmatpush1.bf16.msra.mxu0 0
    %752 = vmatprep.subr.bf16.mxu0 0
    %753 = vmatpush1.bf16.msra.mxu0 0
    %754 = vmatprep.subr.bf16.mxu0 0
    %755 = vmatpush1.bf16.msra.mxu0 0
    %756 = vmatprep.subr.bf16.mxu0 0
    %757 = vmatpush1.bf16.msra.mxu0 0
    %758 = vmatprep.mubr.bf16.mxu0 0
    %759 = vmatmul.mubr.bf16.gmra.mrb[0].mxu0 %v721
    %v760 = vpop.f32.mrb[0].mxu0
    %v761 = vadd.f32 %v692, %v760
    %v762 = vpop.f32.mrb[0].mxu0
    %v763 = vadd.f32 %v692, %v762
    %v764 = vpop.f32.mrb[0].mxu0
    %v765 = vadd.f32 %v697, %v764
    %v766 = vpop.f32.mrb[0].mxu0
    %v767 = vadd.f32 %v697, %v766
    %768 = vmatprep.mubr.bf16.mxu0 0
    %769 = vmatmul.mubr.bf16.gmra.mrb[0].mxu0 %v724
    %v770 = vpop.f32.mrb[0].mxu0
    %v771 = vadd.f32 %v702, %v770
    %v772 = vpop.f32.mrb[0].mxu0
    %v773 = vadd.f32 %v702, %v772
    %v774 = vpop.f32.mrb[0].mxu0
    %v775 = vadd.f32 %v707, %v774
    %v776 = vpop.f32.mrb[0].mxu0
    %v777 = vadd.f32 %v707, %v776
    %778 = vdwg.mxu0
    %779 = vmatprep.subr.bf16.mxu0 %v684
    %780 = vmatpush1.bf16.msra.mxu0 %v683
    %781 = vmatprep.subr.bf16.mxu0 %v688
    %782 = vmatpush1.bf16.msra.mxu0 %v687
    %783 = vmatprep.subr.bf16.mxu0 0
    %784 = vmatpush1.bf16.msra.mxu0 0
    %785 = vmatprep.subr.bf16.mxu0 0
    %786 = vmatpush1.bf16.msra.mxu0 0
    %787 = vmatprep.subr.bf16.mxu0 0
    %788 = vmatpush1.bf16.msra.mxu0 0
    %789 = vmatprep.subr.bf16.mxu0 0
    %790 = vmatpush1.bf16.msra.mxu0 0
    %791 = vmatprep.subr.bf16.mxu0 0
    %792 = vmatpush1.bf16.msra.mxu0 0
    %793 = vmatprep.subr.bf16.mxu0 0
    %794 = vmatpush1.bf16.msra.mxu0 0
    %795 = vmatprep.subr.bf16.mxu0 0
    %796 = vmatpush1.bf16.msra.mxu0 0
    %797 = vmatprep.subr.bf16.mxu0 0
    %798 = vmatpush1.bf16.msra.mxu0 0
    %799 = vmatprep.subr.bf16.mxu0 0
    %800 = vmatpush1.bf16.msra.mxu0 0
    %801 = vmatprep.subr.bf16.mxu0 0
    %802 = vmatpush1.bf16.msra.mxu0 0
    %803 = vmatprep.subr.bf16.mxu0 0
    %804 = vmatpush1.bf16.msra.mxu0 0
    %805 = vmatprep.subr.bf16.mxu0 0
    %806 = vmatpush1.bf16.msra.mxu0 0
    %807 = vmatprep.subr.bf16.mxu0 0
    %808 = vmatpush1.bf16.msra.mxu0 0
    %809 = vmatprep.subr.bf16.mxu0 0
    %810 = vmatpush1.bf16.msra.mxu0 0
    %811 = vmatprep.mubr.bf16.mxu0 0
    %812 = vmatmul.mubr.bf16.gmra.mrb[0].mxu0 %v721
    %v813 = vpop.f32.mrb[0].mxu0
    %v814 = vadd.f32 %v692, %v813
    %v815 = vpop.f32.mrb[0].mxu0
    %v816 = vadd.f32 %v692, %v815
    %v817 = vpop.f32.mrb[0].mxu0
    %v818 = vadd.f32 %v697, %v817
    %v819 = vpop.f32.mrb[0].mxu0
    %v820 = vadd.f32 %v697, %v819
    %821 = vmatprep.mubr.bf16.mxu0 0
    %822 = vmatmul.mubr.bf16.gmra.mrb[0].mxu0 %v724
    %v823 = vpop.f32.mrb[0].mxu0
    %v824 = vadd.f32 %v702, %v823
    %v825 = vpop.f32.mrb[0].mxu0
    %v826 = vadd.f32 %v702, %v825
    %v827 = vpop.f32.mrb[0].mxu0
    %v828 = vadd.f32 %v707, %v827
    %v829 = vpop.f32.mrb[0].mxu0
    %v830 = vadd.f32 %v707, %v829
    %831 = vdwg.mxu0
    %v832 = vadd.f32 %v761, %v763
    %833 = vadd.xlane.f32.xlu0 %v832
    %v834 = vpop.xlane.xlu0 %833
    %v835 = vadd.f32 %v765, %v767
    %836 = vadd.xlane.f32.xlu0 %v835
    %v837 = vpop.xlane.xlu0 %836
    %v838 = vadd.f32 %v771, %v773
    %839 = vadd.xlane.f32.xlu0 %v838
    %v840 = vpop.xlane.xlu0 %839
    %v841 = vadd.f32 %v775, %v777
    %842 = vadd.xlane.f32.xlu0 %v841
    %v843 = vpop.xlane.xlu0 %842
    %v844 = vmul.f32 %v834, %v538
    %v845 = vmul.f32 %v837, %v538
    %v846 = vmul.f32 %v840, %v538
    %v847 = vmul.f32 %v843, %v538
    %v848 = vsub.f32 %v761, %v844
    %v849 = vsub.f32 %v763, %v844
    %v850 = vsub.f32 %v765, %v845
    %v851 = vsub.f32 %v767, %v845
    %v852 = vsub.f32 %v771, %v846
    %v853 = vsub.f32 %v773, %v846
    %v854 = vsub.f32 %v775, %v847
    %v855 = vsub.f32 %v777, %v847
    %v856 = vmul.f32 %v848, %v848
    %v857 = vmul.f32 %v849, %v849
    %v858 = vmul.f32 %v850, %v850
    %v859 = vmul.f32 %v851, %v851
    %v860 = vmul.f32 %v852, %v852
    %v861 = vmul.f32 %v853, %v853
    %v862 = vmul.f32 %v854, %v854
    %v863 = vmul.f32 %v855, %v855
    %v864 = vadd.f32 %v856, %v857
    %865 = vadd.xlane.f32.xlu0 %v864
    %v866 = vpop.xlane.xlu0 %865
    %v867 = vadd.f32 %v858, %v859
    %868 = vadd.xlane.f32.xlu0 %v867
    %v869 = vpop.xlane.xlu0 %868
    %v870 = vadd.f32 %v860, %v861
    %871 = vadd.xlane.f32.xlu0 %v870
    %v872 = vpop.xlane.xlu0 %871
    %v873 = vadd.f32 %v862, %v863
    %874 = vadd.xlane.f32.xlu0 %v873
    %v875 = vpop.xlane.xlu0 %874
    %v876 = vmul.f32 %v866, %v538
    %v877 = vmul.f32 %v869, %v538
    %v878 = vmul.f32 %v872, %v538
    %v879 = vmul.f32 %v875, %v538
    %v880 = vadd.f32 %v876, 1e-05
    %v881 = vadd.f32 %v877, 1e-05
    %v882 = vadd.f32 %v878, 1e-05
    %v883 = vadd.f32 %v879, 1e-05
    %v884 = vrsqrt.pop %v880
    %v885 = vrsqrt.pop %v881
    %v886 = vrsqrt.pop %v882
    %v887 = vrsqrt.pop %v883
    %v888 = vmul.f32 %v848, %v884
    %v889 = vmul.f32 %v849, %v884
    %v890 = vmul.f32 %v850, %v885
    %v891 = vmul.f32 %v851, %v885
    %v892 = vmul.f32 %v852, %v886
    %v893 = vmul.f32 %v853, %v886
    %v894 = vmul.f32 %v854, %v887
    %v895 = vmul.f32 %v855, %v887
    %v896 = vmax.f32 %v888, 0.0
    %v897 = vmax.f32 %v889, 0.0
    %v898 = vmax.f32 %v890, 0.0
    %v899 = vmax.f32 %v891, 0.0
    %v900 = vmax.f32 %v892, 0.0
    %v901 = vmax.f32 %v893, 0.0
    %v902 = vmax.f32 %v894, 0.0
    %v903 = vmax.f32 %v895, 0.0
    %v904 = vadd.f32 %v814, %v816
    %905 = vadd.xlane.f32.xlu0 %v904
    %v906 = vpop.xlane.xlu0 %905
    %v907 = vadd.f32 %v818, %v820
    %908 = vadd.xlane.f32.xlu0 %v907
    %v909 = vpop.xlane.xlu0 %908
    %v910 = vadd.f32 %v824, %v826
    %911 = vadd.xlane.f32.xlu0 %v910
    %v912 = vpop.xlane.xlu0 %911
    %v913 = vadd.f32 %v828, %v830
    %914 = vadd.xlane.f32.xlu0 %v913
    %v915 = vpop.xlane.xlu0 %914
    %v916 = vmul.f32 %v906, %v538
    %v917 = vmul.f32 %v909, %v538
    %v918 = vmul.f32 %v912, %v538
    %v919 = vmul.f32 %v915, %v538
    %v920 = vsub.f32 %v814, %v916
    %v921 = vsub.f32 %v816, %v916
    %v922 = vsub.f32 %v818, %v917
    %v923 = vsub.f32 %v820, %v917
    %v924 = vsub.f32 %v824, %v918
    %v925 = vsub.f32 %v826, %v918
    %v926 = vsub.f32 %v828, %v919
    %v927 = vsub.f32 %v830, %v919
    %v928 = vmul.f32 %v920, %v920
    %v929 = vmul.f32 %v921, %v921
    %v930 = vmul.f32 %v922, %v922
    %v931 = vmul.f32 %v923, %v923
    %v932 = vmul.f32 %v924, %v924
    %v933 = vmul.f32 %v925, %v925
    %v934 = vmul.f32 %v926, %v926
    %v935 = vmul.f32 %v927, %v927
    %v936 = vadd.f32 %v928, %v929
    %937 = vadd.xlane.f32.xlu0 %v936
    %v938 = vpop.xlane.xlu0 %937
    %v939 = vadd.f32 %v930, %v931
    %940 = vadd.xlane.f32.xlu0 %v939
    %v941 = vpop.xlane.xlu0 %940
    %v942 = vadd.f32 %v932, %v933
    %943 = vadd.xlane.f32.xlu0 %v942
    %v944 = vpop.xlane.xlu0 %943
    %v945 = vadd.f32 %v934, %v935
    %946 = vadd.xlane.f32.xlu0 %v945
    %v947 = vpop.xlane.xlu0 %946
    %v948 = vmul.f32 %v938, %v538
    %v949 = vmul.f32 %v941, %v538
    %v950 = vmul.f32 %v944, %v538
    %v951 = vmul.f32 %v947, %v538
    %v952 = vadd.f32 %v948, 1e-05
    %v953 = vadd.f32 %v949, 1e-05
    %v954 = vadd.f32 %v950, 1e-05
    %v955 = vadd.f32 %v951, 1e-05
    %v956 = vrsqrt.pop %v952
    %v957 = vrsqrt.pop %v953
    %v958 = vrsqrt.pop %v954
    %v959 = vrsqrt.pop %v955
    %v960 = vmul.f32 %v920, %v956
    %v961 = vmul.f32 %v921, %v956
    %v962 = vmul.f32 %v922, %v957
    %v963 = vmul.f32 %v923, %v957
    %v964 = vmul.f32 %v924, %v958
    %v965 = vmul.f32 %v925, %v958
    %v966 = vmul.f32 %v926, %v959
    %v967 = vmul.f32 %v927, %v959
    %v968 = vmax.f32 %v960, 0.0
    %v969 = vmax.f32 %v961, 0.0
    %v970 = vmax.f32 %v962, 0.0
    %v971 = vmax.f32 %v963, 0.0
    %v972 = vmax.f32 %v964, 0.0
    %v973 = vmax.f32 %v965, 0.0
    %v974 = vmax.f32 %v966, 0.0
    %v975 = vmax.f32 %v967, 0.0
    %s976 = scalar_lea.vmem %s4, 64
    %v977 = vld [vmem:[%s976] sm:$0xf]
    %v978 = vld [vmem:[%s976 + $0x4] sm:$0xf]
    %v979 = vld [vmem:[%s976 + $0x8] sm:$0xf]
    %v980 = vld [vmem:[%s976 + $0xc] sm:$0xf]
    %s981 = scalar_lea.vmem %s5, 64
    %v982 = vld [vmem:[%s981] sm:$0xff]
    %v983 = vld [vmem:[%s981 + $0x8] sm:$0xff]
    %v984 = vld [vmem:[%s981 + $0x10] sm:$0xff]
    %v985 = vld [vmem:[%s981 + $0x18] sm:$0xff]
    %v986 = vpack.c.bf16 %v898, %v896
    %v987 = vpack.c.bf16 %v899, %v897
    %v988 = vpack.c.bf16 %v970, %v968
    %v989 = vpack.c.bf16 %v971, %v969
    %v990 = vpack.c.bf16 %v902, %v900
    %v991 = vpack.c.bf16 %v903, %v901
    %v992 = vpack.c.bf16 %v974, %v972
    %v993 = vpack.c.bf16 %v975, %v973
    %995 = vset.pattern.permute.xlu0 0
    %996 = vperm.xlu0 %995, %v982
    %v997 = vpop.permute.xlu0 %996
    %1000 = vset.pattern.permute.xlu0 0
    %1001 = vperm.xlu0 %1000, %v983
    %v1002 = vpop.permute.xlu0 %1001
    %1004 = vset.pattern.permute.xlu0 0
    %1005 = vperm.xlu0 %1004, %v984
    %v1006 = vpop.permute.xlu0 %1005
    %1008 = vset.pattern.permute.xlu0 0
    %1009 = vperm.xlu0 %1008, %v985
    %v1010 = vpop.permute.xlu0 %1009
    %v1015 = vunpack.c.l.b16 %v977
    %v1016 = vunpack.c.l.b16 %v978
    %v1017 = vunpack.c.l.b16 %v979
    %v1018 = vunpack.c.l.b16 %v980
    %v1019 = vpack.c.b16 %v1016, %v1015
    %v1020 = vpack.c.b16 %v1018, %v1017
    %v1022 = vsel %vm719, %v1019, 0
    %v1025 = vsel %vm719, %v1020, 0
    %1027 = vmatprep.subr.bf16.mxu0 %v987
    %1028 = vmatpush1.bf16.msra.mxu0 %v986
    %1029 = vmatprep.subr.bf16.mxu0 %v991
    %1030 = vmatpush1.bf16.msra.mxu0 %v990
    %1031 = vmatprep.subr.bf16.mxu0 0
    %1032 = vmatpush1.bf16.msra.mxu0 0
    %1033 = vmatprep.subr.bf16.mxu0 0
    %1034 = vmatpush1.bf16.msra.mxu0 0
    %1035 = vmatprep.subr.bf16.mxu0 0
    %1036 = vmatpush1.bf16.msra.mxu0 0
    %1037 = vmatprep.subr.bf16.mxu0 0
    %1038 = vmatpush1.bf16.msra.mxu0 0
    %1039 = vmatprep.subr.bf16.mxu0 0
    %1040 = vmatpush1.bf16.msra.mxu0 0
    %1041 = vmatprep.subr.bf16.mxu0 0
    %1042 = vmatpush1.bf16.msra.mxu0 0
    %1043 = vmatprep.subr.bf16.mxu0 0
    %1044 = vmatpush1.bf16.msra.mxu0 0
    %1045 = vmatprep.subr.bf16.mxu0 0
    %1046 = vmatpush1.bf16.msra.mxu0 0
    %1047 = vmatprep.subr.bf16.mxu0 0
    %1048 = vmatpush1.bf16.msra.mxu0 0
    %1049 = vmatprep.subr.bf16.mxu0 0
    %1050 = vmatpush1.bf16.msra.mxu0 0
    %1051 = vmatprep.subr.bf16.mxu0 0
    %1052 = vmatpush1.bf16.msra.mxu0 0
    %1053 = vmatprep.subr.bf16.mxu0 0
    %1054 = vmatpush1.bf16.msra.mxu0 0
    %1055 = vmatprep.subr.bf16.mxu0 0
    %1056 = vmatpush1.bf16.msra.mxu0 0
    %1057 = vmatprep.subr.bf16.mxu0 0
    %1058 = vmatpush1.bf16.msra.mxu0 0
    %1059 = vmatprep.mubr.bf16.mxu0 0
    %1060 = vmatmul.mubr.bf16.gmra.mrb[0].mxu0 %v1022
    %v1061 = vpop.f32.mrb[0].mxu0
    %v1062 = vadd.f32 %v997, %v1061
    %v1063 = vpop.f32.mrb[0].mxu0
    %v1064 = vadd.f32 %v997, %v1063
    %v1065 = vpop.f32.mrb[0].mxu0
    %v1066 = vpop.f32.mrb[0].mxu0
    %1067 = vmatprep.mubr.bf16.mxu0 0
    %1068 = vmatmul.mubr.bf16.gmra.mrb[0].mxu0 %v1025
    %v1069 = vpop.f32.mrb[0].mxu0
    %v1070 = vpop.f32.mrb[0].mxu0
    %v1071 = vpop.f32.mrb[0].mxu0
    %v1072 = vpop.f32.mrb[0].mxu0
    %1073 = vdwg.mxu0
    %1074 = vmatprep.subr.bf16.mxu0 %v989
    %1075 = vmatpush1.bf16.msra.mxu0 %v988
    %1076 = vmatprep.subr.bf16.mxu0 %v993
    %1077 = vmatpush1.bf16.msra.mxu0 %v992
    %1078 = vmatprep.subr.bf16.mxu0 0
    %1079 = vmatpush1.bf16.msra.mxu0 0
    %1080 = vmatprep.subr.bf16.mxu0 0
    %1081 = vmatpush1.bf16.msra.mxu0 0
    %1082 = vmatprep.subr.bf16.mxu0 0
    %1083 = vmatpush1.bf16.msra.mxu0 0
    %1084 = vmatprep.subr.bf16.mxu0 0
    %1085 = vmatpush1.bf16.msra.mxu0 0
    %1086 = vmatprep.subr.bf16.mxu0 0
    %1087 = vmatpush1.bf16.msra.mxu0 0
    %1088 = vmatprep.subr.bf16.mxu0 0
    %1089 = vmatpush1.bf16.msra.mxu0 0
    %1090 = vmatprep.subr.bf16.mxu0 0
    %1091 = vmatpush1.bf16.msra.mxu0 0
    %1092 = vmatprep.subr.bf16.mxu0 0
    %1093 = vmatpush1.bf16.msra.mxu0 0
    %1094 = vmatprep.subr.bf16.mxu0 0
    %1095 = vmatpush1.bf16.msra.mxu0 0
    %1096 = vmatprep.subr.bf16.mxu0 0
    %1097 = vmatpush1.bf16.msra.mxu0 0
    %1098 = vmatprep.subr.bf16.mxu0 0
    %1099 = vmatpush1.bf16.msra.mxu0 0
    %1100 = vmatprep.subr.bf16.mxu0 0
    %1101 = vmatpush1.bf16.msra.mxu0 0
    %1102 = vmatprep.subr.bf16.mxu0 0
    %1103 = vmatpush1.bf16.msra.mxu0 0
    %1104 = vmatprep.subr.bf16.mxu0 0
    %1105 = vmatpush1.bf16.msra.mxu0 0
    %1106 = vmatprep.mubr.bf16.mxu0 0
    %1107 = vmatmul.mubr.bf16.gmra.mrb[0].mxu0 %v1022
    %v1108 = vpop.f32.mrb[0].mxu0
    %v1109 = vadd.f32 %v997, %v1108
    %v1110 = vpop.f32.mrb[0].mxu0
    %v1111 = vadd.f32 %v997, %v1110
    %v1112 = vpop.f32.mrb[0].mxu0
    %v1113 = vpop.f32.mrb[0].mxu0
    %1114 = vmatprep.mubr.bf16.mxu0 0
    %1115 = vmatmul.mubr.bf16.gmra.mrb[0].mxu0 %v1025
    %v1116 = vpop.f32.mrb[0].mxu0
    %v1117 = vpop.f32.mrb[0].mxu0
    %v1118 = vpop.f32.mrb[0].mxu0
    %v1119 = vpop.f32.mrb[0].mxu0
    %1120 = vdwg.mxu0
    %1121 = vst [vmem:[#allocation9] sm:$0x1f] %v1062
    %1122 = vst [vmem:[#allocation9 + $0x8] sm:$0x1f] %v1064
    %1123 = vst [vmem:[#allocation9 + $0x10] sm:$0x1f] %v1109
    %1124 = vst [vmem:[#allocation9 + $0x18] sm:$0x1f] %v1111
    %v1125 = vld [vmem:[%s2] sm:$0xff]
    %v1126 = vld [vmem:[%s2 + $0x8] sm:$0xff]
    %v1127 = vld [vmem:[%s2 + $0x10] sm:$0xff]
    %v1128 = vld [vmem:[%s2 + $0x18] sm:$0xff]
    %v1129 = vunpack.c.l.bf16 %v1125
    %v1130 = vunpack.c.h.bf16 %v1125
    %v1131 = vunpack.c.l.bf16 %v1126
    %v1132 = vunpack.c.h.bf16 %v1126
    %v1133 = vunpack.c.l.bf16 %v1127
    %v1134 = vunpack.c.h.bf16 %v1127
    %v1135 = vunpack.c.l.bf16 %v1128
    %v1136 = vunpack.c.h.bf16 %v1128
    %v1137 = vunpack.c.l.bf16 %v64
    %v1138 = vunpack.c.h.bf16 %v64
    %v1139 = vlaneseq
    %v1140 = vshrl.u32 %v1139, 7
    %v1141 = vsub.s32 4, %v1140
    %v1142 = vrot.slane %v1062, %v1141
    %v1143 = vlaneseq
    %v1144 = vshrl.u32 %v1143, 7
    %v1145 = vsub.s32 4, %v1144
    %v1146 = vrot.slane %v1064, %v1145
    %v1147 = vlaneseq
    %v1148 = vshrl.u32 %v1147, 7
    %v1149 = vsub.s32 4, %v1148
    %v1150 = vrot.slane %v1109, %v1149
    %v1151 = vlaneseq
    %v1152 = vshrl.u32 %v1151, 7
    %v1153 = vsub.s32 4, %v1152
    %v1154 = vrot.slane %v1111, %v1153
    %v1159 = vcombine.low %v1142, %v1146
    %v1160 = vcombine.low %v1150, %v1154
    %v1163 = vmul.f32 %v1137, %v1159
    %v1164 = vmul.f32 %v1138, %v1160
    %v1165 = vlaneseq
    %v1166 = vshrl.u32 %v1165, 7
    %v1167 = vsub.s32 0, %v1166
    %v1168 = vrot.slane %v1062, %v1167
    %v1169 = vlaneseq
    %v1170 = vshrl.u32 %v1169, 7
    %v1171 = vsub.s32 0, %v1170
    %v1172 = vrot.slane %v1064, %v1171
    %v1173 = vlaneseq
    %v1174 = vshrl.u32 %v1173, 7
    %v1175 = vsub.s32 0, %v1174
    %v1176 = vrot.slane %v1109, %v1175
    %v1177 = vlaneseq
    %v1178 = vshrl.u32 %v1177, 7
    %v1179 = vsub.s32 0, %v1178
    %v1180 = vrot.slane %v1111, %v1179
    %v1181 = vmul.f32 %v1129, %v1168
    %v1182 = vmul.f32 %v1130, %v1172
    %v1183 = vmul.f32 %v1131, %v1176
    %v1184 = vmul.f32 %v1132, %v1180
    %v1189 = vcombine.low %v1181, %v1182
    %v1190 = vcombine.low %v1183, %v1184
    %v1193 = vadd.f32 %v1163, %v1189
    %v1194 = vadd.f32 %v1164, %v1190
    %v1195 = vlaneseq
    %v1196 = vshrl.u32 %v1195, 7
    %v1197 = vsub.s32 1, %v1196
    %v1198 = vrot.slane %v1062, %v1197
    %v1199 = vlaneseq
    %v1200 = vshrl.u32 %v1199, 7
    %v1201 = vsub.s32 1, %v1200
    %v1202 = vrot.slane %v1064, %v1201
    %v1203 = vlaneseq
    %v1204 = vshrl.u32 %v1203, 7
    %v1205 = vsub.s32 1, %v1204
    %v1206 = vrot.slane %v1109, %v1205
    %v1207 = vlaneseq
    %v1208 = vshrl.u32 %v1207, 7
    %v1209 = vsub.s32 1, %v1208
    %v1210 = vrot.slane %v1111, %v1209
    %v1211 = vmul.f32 %v1129, %v1198
    %v1212 = vmul.f32 %v1130, %v1202
    %v1213 = vmul.f32 %v1131, %v1206
    %v1214 = vmul.f32 %v1132, %v1210
    %v1219 = vcombine.high %v1211, %v1212
    %v1220 = vcombine.high %v1213, %v1214
    %v1223 = vadd.f32 %v1193, %v1219
    %v1224 = vadd.f32 %v1194, %v1220
    %v1225 = vlaneseq
    %v1226 = vshrl.u32 %v1225, 7
    %v1227 = vsub.s32 2, %v1226
    %v1228 = vrot.slane %v1062, %v1227
    %v1229 = vlaneseq
    %v1230 = vshrl.u32 %v1229, 7
    %v1231 = vsub.s32 2, %v1230
    %v1232 = vrot.slane %v1064, %v1231
    %v1233 = vlaneseq
    %v1234 = vshrl.u32 %v1233, 7
    %v1235 = vsub.s32 2, %v1234
    %v1236 = vrot.slane %v1109, %v1235
    %v1237 = vlaneseq
    %v1238 = vshrl.u32 %v1237, 7
    %v1239 = vsub.s32 2, %v1238
    %v1240 = vrot.slane %v1111, %v1239
    %v1241 = vmul.f32 %v1133, %v1228
    %v1242 = vmul.f32 %v1134, %v1232
    %v1243 = vmul.f32 %v1135, %v1236
    %v1244 = vmul.f32 %v1136, %v1240
    %v1249 = vcombine.low %v1241, %v1242
    %v1250 = vcombine.low %v1243, %v1244
    %v1253 = vadd.f32 %v1223, %v1249
    %v1254 = vadd.f32 %v1224, %v1250
    %v1255 = vlaneseq
    %v1256 = vshrl.u32 %v1255, 7
    %v1257 = vsub.s32 3, %v1256
    %v1258 = vrot.slane %v1062, %v1257
    %v1259 = vlaneseq
    %v1260 = vshrl.u32 %v1259, 7
    %v1261 = vsub.s32 3, %v1260
    %v1262 = vrot.slane %v1064, %v1261
    %v1263 = vlaneseq
    %v1264 = vshrl.u32 %v1263, 7
    %v1265 = vsub.s32 3, %v1264
    %v1266 = vrot.slane %v1109, %v1265
    %v1267 = vlaneseq
    %v1268 = vshrl.u32 %v1267, 7
    %v1269 = vsub.s32 3, %v1268
    %v1270 = vrot.slane %v1111, %v1269
    %v1271 = vmul.f32 %v1133, %v1258
    %v1272 = vmul.f32 %v1134, %v1262
    %v1273 = vmul.f32 %v1135, %v1266
    %v1274 = vmul.f32 %v1136, %v1270
    %v1279 = vcombine.high %v1271, %v1272
    %v1280 = vcombine.high %v1273, %v1274
    %v1283 = vadd.f32 %v1253, %v1279
    %v1284 = vadd.f32 %v1254, %v1280
    %1285 = vst [vmem:[#allocation8] sm:$0xff] %v1283
    %1286 = vst [vmem:[#allocation8 + $0x8] sm:$0xff] %v1284
    // Predicated region
    $region38: #{tpu_custom_call.1} parent=1 // pred_check
      _
    $region39: #{tpu_custom_call.1} parent=1 // pred_check_branch
      %1288 = sbr.rel (0) target = $region41
    $region40: #{tpu_custom_call.1} parent=1 // pred_region
      %s1290 = ssub.s32 256, 256
      %1291 = vsyncadd [#allocation4], %s1290
      %s1293 = sshll.u32 [#allocation8], 4
      %s1294 = int_to_ptr.vmem [resolvable:$true] %s1293
      %1296 = dma.vmem_to_hbm [thread:$0]  %s1294, 256, %s6, [#allocation4]
    $region41: #{tpu_custom_call.1} parent=1 // pred_fallthru
      _
    // Predicated region
    $region42: #{tpu_custom_call.1} parent=1 // pred_check
      _
    $region43: #{tpu_custom_call.1} parent=1 // pred_check_branch
      %1298 = sbr.rel (0) target = $region45
    $region44: #{tpu_custom_call.1} parent=1 // pred_region
      %s1300 = ssub.s32 512, 512
      %1301 = vsyncadd [#allocation10], %s1300
      %s1303 = sshll.u32 [#allocation9], 4
      %s1304 = int_to_ptr.vmem [resolvable:$true] %s1303
      %1306 = dma.vmem_to_hbm [thread:$0]  %s1304, 512, %s7, [#allocation10]
    $region45: #{tpu_custom_call.1} parent=1 // pred_fallthru
      _
    // Predicated region
    $region46: #{tpu_custom_call.1} parent=1 // pred_check
      _
    $region47: #{tpu_custom_call.1} parent=1 // pred_check_branch
      %1308 = sbr.rel (0) target = $region49
    $region48: #{tpu_custom_call.1} parent=1 // pred_region
      %1309 = dma.done [#allocation4], 256
    $region49: #{tpu_custom_call.1} parent=1 // pred_fallthru
      _
    // Predicated region
    $region50: #{tpu_custom_call.1} parent=1 // pred_check
      _
    $region51: #{tpu_custom_call.1} parent=1 // pred_check_branch
      %1311 = sbr.rel (0) target = $region53
    $region52: #{tpu_custom_call.1} parent=1 // pred_region
      %1312 = dma.done [#allocation10], 512
    $region53: #{tpu_custom_call.1} parent=1 // pred_fallthru
      _
    %1313 = vsyncpa [#allocation3], 1
    %1314 = vsyncpa [#allocation6], 1
    %1315 = vsyncpa [#allocation4], 1
    %1316 = vsyncpa [#allocation10], 1

</llo_original>
